<compile_context>
chip_gen: v6e
topology: v6e:2x2x1
jax: 0.10.0
libtpu: 0.0.40
codegen_flags: <defaults>
</compile_context>

<pallas_src>
import jax
import jax.numpy as jnp
from jax.experimental import pallas as pl
from jax.experimental.pallas import tpu as pltpu


def _round_up(x, m):
    return ((x + m - 1) // m) * m


def _interacted_review_agg_kernel(
        idx_ref,                                  # (TN, K+1) int32: K neighbor ids | node id
        sel_exp_ref, sel_pat_ref,                 # one-hot builder constants (f32)
        t_bd_ref,                                 # block-diag embedding table (bf16)
        fused_w1_ref, b1_ref,                     # fused gather+att1 weight (bf16), bias (f32)
        w2_bd_ref, b2_ref,                        # att layer 2 block-diag (bf16), bias (f32)
        w3_bd_ref,                                # att layer 3 block-diag column (bf16)
        b3_ref,                                   # scalar bias in SMEM (f32)
        o_ref):                                   # (TN, D) f32
    f32 = jnp.float32
    bf16 = jnp.bfloat16
    kp1 = sel_exp_ref.shape[0]
    k = kp1 - 1
    num_r = sel_exp_ref.shape[1] // kp1
    d = o_ref.shape[1]

    # ---- single fused one-hot builder for (neighbors | node); indices are the only per-node HBM read ----
    idx_f = idx_ref[...].astype(f32)                                            # (TN, K+1)
    wide = jnp.dot(idx_f, sel_exp_ref[...], preferred_element_type=f32)         # (TN, (K+1)*NUM_R)
    oh_cat = (wide == sel_pat_ref[...]).astype(bf16)                            # exact {0,1}
    oh_n = oh_cat[:, : k * num_r]                                               # (TN, K*NUM_R), tile-aligned slice

    # ---- neighbor embeddings (needed again for the weighted aggregation) ----
    e_r = jnp.dot(oh_n, t_bd_ref[...], preferred_element_type=f32)              # (TN, K*D) f32

    # ---- fused gather + attention layer 1: relu([oh_n | oh_r] @ fused_w1 + b1) ----
    h1 = jnp.dot(oh_cat, fused_w1_ref[...], preferred_element_type=f32)         # (TN, K*D)
    h1 = jnp.maximum(h1 + b1_ref[...], 0.0)

    # ---- attention layer 2 ----
    h2 = jnp.dot(h1.astype(bf16), w2_bd_ref[...], preferred_element_type=f32)   # (TN, K*D)
    h2 = jnp.maximum(h2 + b2_ref[...], 0.0)

    # ---- attention layer 3 -> per-node logits over the K neighbors ----
    logits = jnp.dot(h2.astype(bf16), w3_bd_ref[...],
                     preferred_element_type=f32) + b3_ref[0, 0]                 # (TN, K)

    # ---- per-node softmax over K neighbors (lane-axis softmax, f32 on the VPU/EUP) ----
    m = jnp.max(logits, axis=-1, keepdims=True)
    p = jnp.exp(logits - m)
    att = p / jnp.sum(p, axis=-1, keepdims=True)                                # (TN, K)

    # ---- VPU weighted aggregation: out[n,:] = sum_k att[n,k] * e_r[n, k*D:(k+1)*D] ----
    acc = att[:, 0:1] * e_r[:, 0:d]
    for kk in range(1, k):
        acc = acc + att[:, kk:kk + 1] * e_r[:, kk * d:(kk + 1) * d]
    o_ref[...] = acc


def build_constants(r2e_weight, params, k):
    """Built ONCE per weight set (cache/reuse across forward calls)."""
    w1a, w1b, b1, w2, b2, w3, b3 = params
    num_r, d = r2e_weight.shape
    f32, bf16 = jnp.float32, jnp.bfloat16

    table = r2e_weight.astype(f32)                                   # (NUM_R, D)
    eye_k = jnp.eye(k, dtype=f32)

    # Fused gather + attention-layer-1 weight (table folded into W1):
    #   rows [0 : K*NUM_R)            -> neighbor one-hot block: kron(I_K, table @ W1a.T)
    #   rows [K*NUM_R : K*NUM_R+NUM_R) -> node one-hot block:     tile(table @ W1b.T, (1, K))
    tw1a = table @ w1a.T.astype(f32)                                 # (NUM_R, D)
    tw1b = table @ w1b.T.astype(f32)                                 # (NUM_R, D)
    fused_w1 = jnp.concatenate(
        [jnp.kron(eye_k, tw1a), jnp.tile(tw1b, (1, k))], axis=0)     # (K*NUM_R + NUM_R, K*D)

    t_bd = jnp.kron(eye_k, table)                                    # (K*NUM_R, K*D)
    w2_bd = jnp.kron(eye_k, w2.T.astype(f32))                        # (K*D, K*D)
    w3_bd = jnp.kron(eye_k, w3.T.astype(f32))                        # (K*D, K)
    b1_w = jnp.tile(b1.astype(f32).reshape(1, d), (1, k))            # (1, K*D)
    b2_w = jnp.tile(b2.astype(f32).reshape(1, d), (1, k))            # (1, K*D)
    b3_s = b3.astype(f32).reshape(1, 1)                              # (1, 1) -> SMEM

    # One-hot builder over the packed (K neighbors | node) index row.
    eye_k1 = jnp.eye(k + 1, dtype=f32)
    sel_exp = jnp.kron(eye_k1, jnp.ones((1, num_r), f32))            # (K+1, (K+1)*NUM_R)
    sel_pat = jnp.tile(jnp.arange(num_r, dtype=f32), (k + 1,))[None] # (1, (K+1)*NUM_R)

    return dict(
        sel_exp=sel_exp, sel_pat=sel_pat,
        t_bd=t_bd.astype(bf16),
        fused_w1=fused_w1.astype(bf16), b1_w=b1_w,
        w2_bd=w2_bd.astype(bf16), b2_w=b2_w,
        w3_bd=w3_bd.astype(bf16), b3_s=b3_s,
    )


def interacted_review_aggregation(nodes, neighs, r2e_weight, params, tn=None, consts=None):
    """nodes: (N,) int node ids, neighs: (N, K) int neighbor ids, r2e_weight: (NUM_R, D)."""
    n, k = neighs.shape
    num_r, d = r2e_weight.shape
    f32 = jnp.float32

    if consts is None:
        consts = build_constants(r2e_weight, params, k)
    c = consts

    # Node-batch tile (multiple of 8 sublanes). On v7x pick tn so ceil(N/tn) is even (2 TCs).
    if tn is None:
        tn = min(256, _round_up(n, 8))
    tn = max(8, _round_up(tn, 8))
    n_pad = _round_up(n, tn)
    nb = n_pad // tn

    # Pack neighbor ids and node id into ONE int32 block per node (single per-step DMA stream).
    idx = jnp.zeros((n_pad, k + 1), jnp.int32)
    idx = idx.at[:n, :k].set(neighs.astype(jnp.int32))
    idx = idx.at[:n, k].set(nodes.astype(jnp.int32))

    def const_spec(arr):
        return pl.BlockSpec(arr.shape, lambda i: (0, 0))

    out_pad = pl.pallas_call(
        _interacted_review_agg_kernel,
        out_shape=jax.ShapeDtypeStruct((n_pad, d), f32),
        grid_spec=pltpu.PrefetchScalarGridSpec(
            num_scalar_prefetch=0,
            grid=(nb,),
            in_specs=[
                pl.BlockSpec((tn, k + 1), lambda i: (i, 0)),          # packed indices (per block)
                const_spec(c['sel_exp']),                             # one-hot expand matrix
                const_spec(c['sel_pat']),                             # one-hot rating pattern
                const_spec(c['t_bd']),                                # block-diag table (bf16)
                const_spec(c['fused_w1']),                            # fused gather+att1 (bf16)
                const_spec(c['b1_w']),                                # b1 (tiled, f32)
                const_spec(c['w2_bd']),                               # W2 block-diag (bf16)
                const_spec(c['b2_w']),                                # b2 (tiled, f32)
                const_spec(c['w3_bd']),                               # W3 block-diag column (bf16)
                pl.BlockSpec(memory_space=pltpu.MemorySpace.SMEM),    # b3 scalar
            ],
            out_specs=pl.BlockSpec((tn, d), lambda i: (i, 0)),
        ),
        compiler_params=pltpu.CompilerParams(
            dimension_semantics=("parallel",),
            vmem_limit_bytes=16 * 1024 * 1024,
        ),
    )(idx, c['sel_exp'], c['sel_pat'], c['t_bd'], c['fused_w1'], c['b1_w'],
      c['w2_bd'], c['b2_w'], c['w3_bd'], c['b3_s'])

    return out_pad[:n]


def reference_forward(nodes, neighs, r2e_weight, params):
    """Pure-JAX reference mirroring the PyTorch loop (eval mode)."""
    w1a, w1b, b1, w2, b2, w3, b3 = params
    outs = []
    for i in range(nodes.shape[0]):
        er = r2e_weight[neighs[i]]                     # (K, D)
        rr = r2e_weight[nodes[i]][None, :]             # (1, D)
        h1 = jax.nn.relu(er @ w1a.T + rr @ w1b.T + b1)
        h2 = jax.nn.relu(h1 @ w2.T + b2)
        logits = h2 @ w3.T + b3                        # (K, 1)
        att = jax.nn.softmax(logits, axis=0)
        outs.append((er.T @ att).T[0])                 # (D,)
    return jnp.stack(outs, axis=0)


if __name__ == "__main__":
    # Small deterministic setup consistent with the module:
    #   embed_dim D = 32, N = 20 nodes, K = 8 interacted neighbors each,
    #   r2e embedding table with 16 rows.  tn=8 exercises a multi-step grid + padding.
    D = 32
    N = 20
    K = 8
    NUM_R = 16

    key = jax.random.PRNGKey(0)
    k_emb, k_w1, k_b1, k_w2, k_b2, k_w3, k_b3, k_nodes, k_neighs = jax.random.split(key, 9)

    # nn.Embedding(num_ratings, embed_dim) weight
    r2e_weight = jax.random.normal(k_emb, (NUM_R, D), dtype=jnp.float32) * 0.1

    # Attention params: att1: Linear(2D, D), att2: Linear(D, D), att3: Linear(D, 1)
    w1 = jax.random.normal(k_w1, (D, 2 * D), dtype=jnp.float32) * 0.1
    w1a, w1b = w1[:, :D], w1[:, D:]                    # split of the concat weight
    b1 = jax.random.normal(k_b1, (1, D), dtype=jnp.float32) * 0.1
    w2 = jax.random.normal(k_w2, (D, D), dtype=jnp.float32) * 0.1
    b2 = jax.random.normal(k_b2, (1, D), dtype=jnp.float32) * 0.1
    w3 = jax.random.normal(k_w3, (1, D), dtype=jnp.float32) * 0.1
    b3 = jax.random.normal(k_b3, (1, 1), dtype=jnp.float32) * 0.1
    params = (w1a, w1b, b1, w2, b2, w3, b3)

    # nodes and their interacted-review neighbor index lists (fixed K per node)
    nodes = jax.random.randint(k_nodes, (N,), 0, NUM_R)
    neighs = jax.random.randint(k_neighs, (N, K), 0, NUM_R)

    # Constants are built once and reused across calls.
    consts = build_constants(r2e_weight, params, K)
    out = interacted_review_aggregation(nodes, neighs, r2e_weight, params, tn=8, consts=consts)
    out = jax.block_until_ready(out)

    ref = reference_forward(nodes, neighs, r2e_weight, params)
    assert out.shape == (N, D)
    # bf16 MXU operands with f32 accumulation -> relaxed tolerance vs the f32 reference.
    assert jnp.allclose(out, ref, atol=1e-2, rtol=1e-2), "mismatch vs reference"

    print("KERNEL_OK")
</pallas_src>

<mosaic_0001>
module attributes {stable_mosaic.version = 11 : i64} {
  func.func @_interacted_review_agg_kernel(%arg0: i32, %arg1: memref<8x9xi32, #tpu.memory_space<vmem>>, %arg2: memref<9x144xf32, #tpu.memory_space<vmem>>, %arg3: memref<1x144xf32, #tpu.memory_space<vmem>>, %arg4: memref<128x256xbf16, #tpu.memory_space<vmem>>, %arg5: memref<144x256xbf16, #tpu.memory_space<vmem>>, %arg6: memref<1x256xf32, #tpu.memory_space<vmem>>, %arg7: memref<256x256xbf16, #tpu.memory_space<vmem>>, %arg8: memref<1x256xf32, #tpu.memory_space<vmem>>, %arg9: memref<256x8xbf16, #tpu.memory_space<vmem>>, %arg10: memref<1x1xf32, #tpu.memory_space<smem>>, %arg11: memref<8x32xf32, #tpu.memory_space<vmem>>) attributes {dimension_semantics = [#tpu.dimension_semantics<parallel>], iteration_bounds = array<i64: 3>, scalar_prefetch = 0 : i64, scratch_operands = 0 : i64, tpu.core_type = #tpu.core_type<tc>, window_params = [{transform_indices = @transform_0, window_bounds = array<i64: 8, 9>}, {pipeline_mode = #tpu.pipeline_mode<synchronous>, transform_indices = @transform_1, window_bounds = array<i64: 9, 144>}, {pipeline_mode = #tpu.pipeline_mode<synchronous>, transform_indices = @transform_2, window_bounds = array<i64: 1, 144>}, {pipeline_mode = #tpu.pipeline_mode<synchronous>, transform_indices = @transform_3, window_bounds = array<i64: 128, 256>}, {pipeline_mode = #tpu.pipeline_mode<synchronous>, transform_indices = @transform_4, window_bounds = array<i64: 144, 256>}, {pipeline_mode = #tpu.pipeline_mode<synchronous>, transform_indices = @transform_5, window_bounds = array<i64: 1, 256>}, {pipeline_mode = #tpu.pipeline_mode<synchronous>, transform_indices = @transform_6, window_bounds = array<i64: 256, 256>}, {pipeline_mode = #tpu.pipeline_mode<synchronous>, transform_indices = @transform_7, window_bounds = array<i64: 1, 256>}, {pipeline_mode = #tpu.pipeline_mode<synchronous>, transform_indices = @transform_8, window_bounds = array<i64: 256, 8>}, {transform_indices = @transform_9, window_bounds = array<i64: 1, 1>}, {transform_indices = @transform_10, window_bounds = array<i64: 8, 32>}]} {
    %c0 = arith.constant 0 : index
    %c0_0 = arith.constant 0 : index
    %0 = vector.load %arg1[%c0, %c0_0] : memref<8x9xi32, #tpu.memory_space<vmem>>, vector<8x9xi32>
    %1 = arith.sitofp %0 : vector<8x9xi32> to vector<8x9xf32>
    %c0_1 = arith.constant 0 : index
    %c0_2 = arith.constant 0 : index
    %2 = vector.load %arg2[%c0_1, %c0_2] : memref<9x144xf32, #tpu.memory_space<vmem>>, vector<9x144xf32>
    %cst = arith.constant dense<0.000000e+00> : vector<8x144xf32>
    %3 = tpu.matmul %1, %2, %cst {dimension_numbers = #tpu.dot_dimension_numbers<[1], [0], [0], [1], [0, 0, 1, 1], [], []>} : vector<8x9xf32>, vector<9x144xf32>, vector<8x144xf32> -> vector<8x144xf32>
    %c0_3 = arith.constant 0 : index
    %c0_4 = arith.constant 0 : index
    %4 = vector.load %arg3[%c0_3, %c0_4] : memref<1x144xf32, #tpu.memory_space<vmem>>, vector<1x144xf32>
    %5 = vector.broadcast %4 : vector<1x144xf32> to vector<8x144xf32>
    %6 = arith.cmpf oeq, %3, %5 : vector<8x144xf32>
    %7 = arith.extui %6 : vector<8x144xi1> to vector<8x144xi32>
    %8 = arith.sitofp %7 : vector<8x144xi32> to vector<8x144xf32>
    %9 = arith.truncf %8 : vector<8x144xf32> to vector<8x144xbf16>
    %10 = vector.extract_strided_slice %9 {offsets = [0, 0], sizes = [8, 128], strides = [1, 1]} : vector<8x144xbf16> to vector<8x128xbf16>
    %c0_5 = arith.constant 0 : index
    %c0_6 = arith.constant 0 : index
    %11 = vector.load %arg4[%c0_5, %c0_6] : memref<128x256xbf16, #tpu.memory_space<vmem>>, vector<128x256xbf16>
    %cst_7 = arith.constant dense<0.000000e+00> : vector<8x256xf32>
    %12 = tpu.matmul %10, %11, %cst_7 {dimension_numbers = #tpu.dot_dimension_numbers<[1], [0], [0], [1], [0, 0, 1, 1], [], []>} : vector<8x128xbf16>, vector<128x256xbf16>, vector<8x256xf32> -> vector<8x256xf32>
    %c0_8 = arith.constant 0 : index
    %c0_9 = arith.constant 0 : index
    %13 = vector.load %arg5[%c0_8, %c0_9] : memref<144x256xbf16, #tpu.memory_space<vmem>>, vector<144x256xbf16>
    %cst_10 = arith.constant dense<0.000000e+00> : vector<8x256xf32>
    %14 = tpu.matmul %9, %13, %cst_10 {dimension_numbers = #tpu.dot_dimension_numbers<[1], [0], [0], [1], [0, 0, 1, 1], [], []>} : vector<8x144xbf16>, vector<144x256xbf16>, vector<8x256xf32> -> vector<8x256xf32>
    %c0_11 = arith.constant 0 : index
    %c0_12 = arith.constant 0 : index
    %15 = vector.load %arg6[%c0_11, %c0_12] : memref<1x256xf32, #tpu.memory_space<vmem>>, vector<1x256xf32>
    %16 = vector.broadcast %15 : vector<1x256xf32> to vector<8x256xf32>
    %17 = arith.addf %14, %16 : vector<8x256xf32>
    %cst_13 = arith.constant 0.000000e+00 : f32
    %18 = vector.broadcast %cst_13 : f32 to vector<8x256xf32>
    %19 = arith.maximumf %17, %18 : vector<8x256xf32>
    %20 = arith.truncf %19 : vector<8x256xf32> to vector<8x256xbf16>
    %c0_14 = arith.constant 0 : index
    %c0_15 = arith.constant 0 : index
    %21 = vector.load %arg7[%c0_14, %c0_15] : memref<256x256xbf16, #tpu.memory_space<vmem>>, vector<256x256xbf16>
    %cst_16 = arith.constant dense<0.000000e+00> : vector<8x256xf32>
    %22 = tpu.matmul %20, %21, %cst_16 {dimension_numbers = #tpu.dot_dimension_numbers<[1], [0], [0], [1], [0, 0, 1, 1], [], []>} : vector<8x256xbf16>, vector<256x256xbf16>, vector<8x256xf32> -> vector<8x256xf32>
    %c0_17 = arith.constant 0 : index
    %c0_18 = arith.constant 0 : index
    %23 = vector.load %arg8[%c0_17, %c0_18] : memref<1x256xf32, #tpu.memory_space<vmem>>, vector<1x256xf32>
    %24 = vector.broadcast %23 : vector<1x256xf32> to vector<8x256xf32>
    %25 = arith.addf %22, %24 : vector<8x256xf32>
    %cst_19 = arith.constant 0.000000e+00 : f32
    %26 = vector.broadcast %cst_19 : f32 to vector<8x256xf32>
    %27 = arith.maximumf %25, %26 : vector<8x256xf32>
    %28 = arith.truncf %27 : vector<8x256xf32> to vector<8x256xbf16>
    %c0_20 = arith.constant 0 : index
    %c0_21 = arith.constant 0 : index
    %29 = vector.load %arg9[%c0_20, %c0_21] : memref<256x8xbf16, #tpu.memory_space<vmem>>, vector<256x8xbf16>
    %cst_22 = arith.constant dense<0.000000e+00> : vector<8x8xf32>
    %30 = tpu.matmul %28, %29, %cst_22 {dimension_numbers = #tpu.dot_dimension_numbers<[1], [0], [0], [1], [0, 0, 1, 1], [], []>} : vector<8x256xbf16>, vector<256x8xbf16>, vector<8x8xf32> -> vector<8x8xf32>
    %c0_23 = arith.constant 0 : index
    %c0_24 = arith.constant 0 : index
    %31 = memref.load %arg10[%c0_23, %c0_24] : memref<1x1xf32, #tpu.memory_space<smem>>
    %32 = vector.broadcast %31 : f32 to vector<8x8xf32>
    %33 = arith.addf %30, %32 : vector<8x8xf32>
    %cst_25 = arith.constant dense<0xFF800000> : vector<8xf32>
    %34 = vector.multi_reduction <maximumf>, %33, %cst_25 [1] : vector<8x8xf32> to vector<8xf32>
    %35 = vector.shape_cast %34 : vector<8xf32> to vector<8x1xf32>
    %36 = vector.broadcast %35 : vector<8x1xf32> to vector<8x8xf32>
    %37 = arith.subf %33, %36 : vector<8x8xf32>
    %38 = math.exp %37 : vector<8x8xf32>
    %cst_26 = arith.constant dense<0.000000e+00> : vector<8xf32>
    %39 = vector.multi_reduction <add>, %38, %cst_26 [1] : vector<8x8xf32> to vector<8xf32>
    %40 = vector.shape_cast %39 : vector<8xf32> to vector<8x1xf32>
    %41 = vector.broadcast %40 : vector<8x1xf32> to vector<8x8xf32>
    %42 = arith.divf %38, %41 : vector<8x8xf32>
    %43 = vector.extract_strided_slice %42 {offsets = [0, 0], sizes = [8, 1], strides = [1, 1]} : vector<8x8xf32> to vector<8x1xf32>
    %44 = vector.extract_strided_slice %12 {offsets = [0, 0], sizes = [8, 32], strides = [1, 1]} : vector<8x256xf32> to vector<8x32xf32>
    %45 = vector.broadcast %43 : vector<8x1xf32> to vector<8x32xf32>
    %46 = arith.mulf %45, %44 : vector<8x32xf32>
    %47 = vector.extract_strided_slice %42 {offsets = [0, 1], sizes = [8, 1], strides = [1, 1]} : vector<8x8xf32> to vector<8x1xf32>
    %48 = vector.extract_strided_slice %12 {offsets = [0, 32], sizes = [8, 32], strides = [1, 1]} : vector<8x256xf32> to vector<8x32xf32>
    %49 = vector.broadcast %47 : vector<8x1xf32> to vector<8x32xf32>
    %50 = arith.mulf %49, %48 : vector<8x32xf32>
    %51 = arith.addf %46, %50 : vector<8x32xf32>
    %52 = vector.extract_strided_slice %42 {offsets = [0, 2], sizes = [8, 1], strides = [1, 1]} : vector<8x8xf32> to vector<8x1xf32>
    %53 = vector.extract_strided_slice %12 {offsets = [0, 64], sizes = [8, 32], strides = [1, 1]} : vector<8x256xf32> to vector<8x32xf32>
    %54 = vector.broadcast %52 : vector<8x1xf32> to vector<8x32xf32>
    %55 = arith.mulf %54, %53 : vector<8x32xf32>
    %56 = arith.addf %51, %55 : vector<8x32xf32>
    %57 = vector.extract_strided_slice %42 {offsets = [0, 3], sizes = [8, 1], strides = [1, 1]} : vector<8x8xf32> to vector<8x1xf32>
    %58 = vector.extract_strided_slice %12 {offsets = [0, 96], sizes = [8, 32], strides = [1, 1]} : vector<8x256xf32> to vector<8x32xf32>
    %59 = vector.broadcast %57 : vector<8x1xf32> to vector<8x32xf32>
    %60 = arith.mulf %59, %58 : vector<8x32xf32>
    %61 = arith.addf %56, %60 : vector<8x32xf32>
    %62 = vector.extract_strided_slice %42 {offsets = [0, 4], sizes = [8, 1], strides = [1, 1]} : vector<8x8xf32> to vector<8x1xf32>
    %63 = vector.extract_strided_slice %12 {offsets = [0, 128], sizes = [8, 32], strides = [1, 1]} : vector<8x256xf32> to vector<8x32xf32>
    %64 = vector.broadcast %62 : vector<8x1xf32> to vector<8x32xf32>
    %65 = arith.mulf %64, %63 : vector<8x32xf32>
    %66 = arith.addf %61, %65 : vector<8x32xf32>
    %67 = vector.extract_strided_slice %42 {offsets = [0, 5], sizes = [8, 1], strides = [1, 1]} : vector<8x8xf32> to vector<8x1xf32>
    %68 = vector.extract_strided_slice %12 {offsets = [0, 160], sizes = [8, 32], strides = [1, 1]} : vector<8x256xf32> to vector<8x32xf32>
    %69 = vector.broadcast %67 : vector<8x1xf32> to vector<8x32xf32>
    %70 = arith.mulf %69, %68 : vector<8x32xf32>
    %71 = arith.addf %66, %70 : vector<8x32xf32>
    %72 = vector.extract_strided_slice %42 {offsets = [0, 6], sizes = [8, 1], strides = [1, 1]} : vector<8x8xf32> to vector<8x1xf32>
    %73 = vector.extract_strided_slice %12 {offsets = [0, 192], sizes = [8, 32], strides = [1, 1]} : vector<8x256xf32> to vector<8x32xf32>
    %74 = vector.broadcast %72 : vector<8x1xf32> to vector<8x32xf32>
    %75 = arith.mulf %74, %73 : vector<8x32xf32>
    %76 = arith.addf %71, %75 : vector<8x32xf32>
    %77 = vector.extract_strided_slice %42 {offsets = [0, 7], sizes = [8, 1], strides = [1, 1]} : vector<8x8xf32> to vector<8x1xf32>
    %78 = vector.extract_strided_slice %12 {offsets = [0, 224], sizes = [8, 32], strides = [1, 1]} : vector<8x256xf32> to vector<8x32xf32>
    %79 = vector.broadcast %77 : vector<8x1xf32> to vector<8x32xf32>
    %80 = arith.mulf %79, %78 : vector<8x32xf32>
    %81 = arith.addf %76, %80 : vector<8x32xf32>
    %c0_27 = arith.constant 0 : index
    %c0_28 = arith.constant 0 : index
    %82 = vector.load %arg11[%c0_27, %c0_28] : memref<8x32xf32, #tpu.memory_space<vmem>>, vector<8x32xf32>
    tpu.vector_store %arg11[%c0_27, %c0_28], %81 {strides = array<i32>} : memref<8x32xf32, #tpu.memory_space<vmem>>, vector<8x32xf32>,
    return
  }
  func.func @transform_0(%arg0: i32) -> (i32, i32) {
    %c0_i32 = arith.constant 0 : i32
    %c0_i32_0 = arith.constant 0 : i32
    return %arg0, %c0_i32 : i32, i32
  }
  func.func @transform_1(%arg0: i32) -> (i32, i32) {
    %c0_i32 = arith.constant 0 : i32
    %c0_i32_0 = arith.constant 0 : i32
    %c0_i32_1 = arith.constant 0 : i32
    return %c0_i32, %c0_i32_0 : i32, i32
  }
  func.func @transform_2(%arg0: i32) -> (i32, i32) {
    %c0_i32 = arith.constant 0 : i32
    %c0_i32_0 = arith.constant 0 : i32
    %c0_i32_1 = arith.constant 0 : i32
    return %c0_i32, %c0_i32_0 : i32, i32
  }
  func.func @transform_3(%arg0: i32) -> (i32, i32) {
    %c0_i32 = arith.constant 0 : i32
    %c0_i32_0 = arith.constant 0 : i32
    %c0_i32_1 = arith.constant 0 : i32
    return %c0_i32, %c0_i32_0 : i32, i32
  }
  func.func @transform_4(%arg0: i32) -> (i32, i32) {
    %c0_i32 = arith.constant 0 : i32
    %c0_i32_0 = arith.constant 0 : i32
    %c0_i32_1 = arith.constant 0 : i32
    return %c0_i32, %c0_i32_0 : i32, i32
  }
  func.func @transform_5(%arg0: i32) -> (i32, i32) {
    %c0_i32 = arith.constant 0 : i32
    %c0_i32_0 = arith.constant 0 : i32
    %c0_i32_1 = arith.constant 0 : i32
    return %c0_i32, %c0_i32_0 : i32, i32
  }
  func.func @transform_6(%arg0: i32) -> (i32, i32) {
    %c0_i32 = arith.constant 0 : i32
    %c0_i32_0 = arith.constant 0 : i32
    %c0_i32_1 = arith.constant 0 : i32
    return %c0_i32, %c0_i32_0 : i32, i32
  }
  func.func @transform_7(%arg0: i32) -> (i32, i32) {
    %c0_i32 = arith.constant 0 : i32
    %c0_i32_0 = arith.constant 0 : i32
    %c0_i32_1 = arith.constant 0 : i32
    return %c0_i32, %c0_i32_0 : i32, i32
  }
  func.func @transform_8(%arg0: i32) -> (i32, i32) {
    %c0_i32 = arith.constant 0 : i32
    %c0_i32_0 = arith.constant 0 : i32
    %c0_i32_1 = arith.constant 0 : i32
    return %c0_i32, %c0_i32_0 : i32, i32
  }
  func.func @transform_9(%arg0: i32) -> (i32, i32) {
    %c0_i32 = arith.constant 0 : i32
    %c0_i32_0 = arith.constant 0 : i32
    %c0_i32_1 = arith.constant 0 : i32
    return %c0_i32, %c0_i32_0 : i32, i32
  }
  func.func @transform_10(%arg0: i32) -> (i32, i32) {
    %c0_i32 = arith.constant 0 : i32
    %c0_i32_0 = arith.constant 0 : i32
    return %arg0, %c0_i32 : i32, i32
  }
}

</mosaic_0001>

<llo_original>
// kernel: tpu_custom_call.1
$region0: #{tpu_custom_call.1}
  #allocation0 [shape = 'u32[]', space=smem, size = 0x4, offset = 0x4, fixed_abs, tag = 'smem constant byte address 0x4 - core index']
  #allocation1 [shape = 'u32[144,128]{1,0:T(1,128)}', space=vmem, size = 0x12000, scoped, tag = 'internal scratch']
  #allocation2 [shape = 'f32[1,1]{1,0:T(1,128)S(6)}', space=smem, size = 0x200, scoped, tag = 'scoped memory for tpu_custom_call.1']
  %s0 = inlined_call_operand.vmem [shape: s32[24,9], index: 0, kind: input, shape index: {}]
  %s1 = inlined_call_operand.vmem [shape: f32[9,144], index: 1, kind: input, shape index: {}]
  %s2 = inlined_call_operand.vmem [shape: f32[1,144], index: 2, kind: input, shape index: {}]
  %s3 = inlined_call_operand.hbm [shape: bf16[128,256], index: 3, kind: input, shape index: {}]
  %s4 = inlined_call_operand.vmem [shape: bf16[144,256], index: 4, kind: input, shape index: {}]
  %s5 = inlined_call_operand.hbm [shape: f32[1,256], index: 5, kind: input, shape index: {}]
  %s6 = inlined_call_operand.hbm [shape: bf16[256,256], index: 6, kind: input, shape index: {}]
  %s7 = inlined_call_operand.vmem [shape: f32[1,256], index: 7, kind: input, shape index: {}]
  %s8 = inlined_call_operand.vmem [shape: bf16[256,8], index: 8, kind: input, shape index: {}]
  %s9 = inlined_call_operand.<no memory space> [shape: f32[1,1], index: 9, kind: input, shape index: {}]
  %s10 = inlined_call_operand.hbm [shape: f32[24,32], index: 10, kind: output, shape index: {}]
  %s11 = sld [smem:[#allocation0]]
  $region85: #{tpu_custom_call.1} parent=0
    _
  %s13 = ssub.s32 1, %s11
  %s14 = scalar_select 0, %s13, %s11
  %15 = sst [smem:[#allocation2]] %s9
  $region1: #{tpu_custom_call.1} parent=0
    #allocation3 [shape = 'u8[65536]{0}', space=vmem, size = 0x10000, scoped, tag = 'input window, operand 3, single buffered']
    #allocation4 [shape = 's32[2]{0}', space=sflag, size = 0x8, scoped, tag = 'scoped memory for tpu_custom_call.1']
    #allocation5 [shape = 's32[2]{0}', space=sflag, size = 0x8, scoped, tag = 'scoped memory for tpu_custom_call.1']
    #allocation6 [shape = 'u8[1024]{0}', space=vmem, size = 0x400, scoped, tag = 'input window, operand 5, single buffered']
    #allocation7 [shape = 's32[1]{0}', space=sflag, size = 0x4, scoped, tag = 'scoped memory for tpu_custom_call.1']
    #allocation8 [shape = 'u8[131072]{0}', space=vmem, size = 0x20000, scoped, tag = 'input window, operand 6, single buffered']
    #allocation9 [shape = 'u8[8192]{0}', space=vmem, size = 0x2000, scoped, tag = 'output window, operand 0']
    %16 = vsyncpa [#allocation4], 0
    %17 = vsyncpa [#allocation7], 0
    %18 = vsyncpa [#allocation5], 0
    %s19 = scalar_lea.sflag [#allocation5], 1
    %20 = vsyncpa %s19, 0
    loop: start=0, step=1, limit=5
    $region2: #{tpu_custom_call.1} parent=1 // loop_pre_header
      _
    $region3: #{tpu_custom_call.1} parent=1 // loop_header
      %s22 = sphi 0, %s26
      %p23 = scmp.ge.s32.totalorder %s22, 5
      %s32 = sphi 0, %s34
      %s35 = sphi 0, %s32
      %s36 = sphi 0, %s35
      %s52 = sphi 0, %s36
      %s56 = sphi 0, %s56
      %s58 = sphi 0, %s56
      %s59 = sphi 0, %s58
      %s73 = sphi 0, %s59
      %s77 = sphi 0, %s77
      %s79 = sphi 0, %s77
      %s80 = sphi 0, %s79
      %s94 = sphi 0, %s80
      %s98 = sphi 0, %s98
      %s100 = sphi 0, %s98
      %s101 = sphi 0, %s100
      %s115 = sphi 0, %s101
      %s119 = sphi 0, %s119
      %s121 = sphi 0, %s119
      %s122 = sphi 0, %s121
      %s136 = sphi 0, %s122
      %s140 = sphi 0, %s140
      %s142 = sphi 0, %s140
      %s143 = sphi 0, %s142
      %s157 = sphi 0, %s143
      %s161 = sphi 0, %s161
      %s163 = sphi 0, %s161
      %s164 = sphi 0, %s163
      %s178 = sphi 0, %s164
      %s182 = sphi 0, %s182
      %s184 = sphi 0, %s182
      %s185 = sphi 0, %s184
      %s199 = sphi 0, %s185
      %s203 = sphi 0, %s203
      %s205 = sphi 0, %s203
      %s206 = sphi 0, %s205
      %s220 = sphi 0, %s206
      %s224 = sphi 0, %s224
      %s226 = sphi 0, %s224
      %s227 = sphi 0, %s226
      %s241 = sphi 0, %s227
      %s247 = sphi 0, %s249
      %s250 = sphi 0, %s247
      %s251 = sphi 0, %s250
      %s267 = sphi 0, %s251
    $region4: #{tpu_custom_call.1} parent=1 // loop_header_branch
      %25 = sbr.rel (%p23) target = $region8
    $region5: #{tpu_custom_call.1} parent=1 // loop_body
      %s27 = ssub.s32 %s22, 1
      %s28 = ssub.s32 %s22, 2
      %s29 = sadd.s32 %s22, 1
      %s30 = ssub.s32 %s22, %s29
      %p31 = scmp.eq.s32.totalorder %s30, 0
      %s33 = sadd.s32 %s32, 1
      %s34 = scalar_select %p31, %s32, %s33
      %p37 = pneg %p31
      %p38 = scmp.eq.s32.totalorder %s22, 2
      %p39 = por %p37, %p38
      %p40 = scmp.ne.s32.totalorder %s32, %s35
      %p41 = scmp.eq.s32.totalorder %s22, 0
      %p42 = por %p40, %p41
      %p43 = scmp.ne.s32.totalorder %s32, %s35
      %p44 = scmp.eq.s32.totalorder %s27, 2
      %p45 = por %p43, %p44
      %p46 = scmp.ne.s32.totalorder %s35, %s36
      %p47 = scmp.eq.s32.totalorder %s27, 0
      %p48 = por %p46, %p47
      %p49 = scmp.ne.s32.totalorder %s35, %s36
      %p50 = scmp.eq.s32.totalorder %s28, 2
      %p51 = por %p49, %p50
      %p53 = scmp.ne.s32.totalorder %s36, %s52
      %p54 = scmp.eq.s32.totalorder %s28, 0
      %p55 = por %p53, %p54
      %s57 = sadd.s32 %s56, 1
      %p60 = scmp.eq.s32.totalorder %s22, 2
      %p61 = scmp.ne.s32.totalorder %s56, %s58
      %p62 = scmp.eq.s32.totalorder %s22, 0
      %p63 = por %p61, %p62
      %p64 = scmp.ne.s32.totalorder %s56, %s58
      %p65 = scmp.eq.s32.totalorder %s27, 2
      %p66 = por %p64, %p65
      %p67 = scmp.ne.s32.totalorder %s58, %s59
      %p68 = scmp.eq.s32.totalorder %s27, 0
      %p69 = por %p67, %p68
      %p70 = scmp.ne.s32.totalorder %s58, %s59
      %p71 = scmp.eq.s32.totalorder %s28, 2
      %p72 = por %p70, %p71
      %p74 = scmp.ne.s32.totalorder %s59, %s73
      %p75 = scmp.eq.s32.totalorder %s28, 0
      %p76 = por %p74, %p75
      %s78 = sadd.s32 %s77, 1
      %p81 = scmp.eq.s32.totalorder %s22, 2
      %p82 = scmp.ne.s32.totalorder %s77, %s79
      %p83 = scmp.eq.s32.totalorder %s22, 0
      %p84 = por %p82, %p83
      %p85 = scmp.ne.s32.totalorder %s77, %s79
      %p86 = scmp.eq.s32.totalorder %s27, 2
      %p87 = por %p85, %p86
      %p88 = scmp.ne.s32.totalorder %s79, %s80
      %p89 = scmp.eq.s32.totalorder %s27, 0
      %p90 = por %p88, %p89
      %p91 = scmp.ne.s32.totalorder %s79, %s80
      %p92 = scmp.eq.s32.totalorder %s28, 2
      %p93 = por %p91, %p92
      %p95 = scmp.ne.s32.totalorder %s80, %s94
      %p96 = scmp.eq.s32.totalorder %s28, 0
      %p97 = por %p95, %p96
      %s99 = sadd.s32 %s98, 1
      %p102 = scmp.eq.s32.totalorder %s22, 2
      %p103 = scmp.ne.s32.totalorder %s98, %s100
      %p104 = scmp.eq.s32.totalorder %s22, 0
      %p105 = por %p103, %p104
      %p106 = scmp.ne.s32.totalorder %s98, %s100
      %p107 = scmp.eq.s32.totalorder %s27, 2
      %p108 = por %p106, %p107
      %p109 = scmp.ne.s32.totalorder %s100, %s101
      %p110 = scmp.eq.s32.totalorder %s27, 0
      %p111 = por %p109, %p110
      %p112 = scmp.ne.s32.totalorder %s100, %s101
      %p113 = scmp.eq.s32.totalorder %s28, 2
      %p114 = por %p112, %p113
      %p116 = scmp.ne.s32.totalorder %s101, %s115
      %p117 = scmp.eq.s32.totalorder %s28, 0
      %p118 = por %p116, %p117
      %s120 = sadd.s32 %s119, 1
      %p123 = scmp.eq.s32.totalorder %s22, 2
      %p124 = scmp.ne.s32.totalorder %s119, %s121
      %p125 = scmp.eq.s32.totalorder %s22, 0
      %p126 = por %p124, %p125
      %p127 = scmp.ne.s32.totalorder %s119, %s121
      %p128 = scmp.eq.s32.totalorder %s27, 2
      %p129 = por %p127, %p128
      %p130 = scmp.ne.s32.totalorder %s121, %s122
      %p131 = scmp.eq.s32.totalorder %s27, 0
      %p132 = por %p130, %p131
      %p133 = scmp.ne.s32.totalorder %s121, %s122
      %p134 = scmp.eq.s32.totalorder %s28, 2
      %p135 = por %p133, %p134
      %p137 = scmp.ne.s32.totalorder %s122, %s136
      %p138 = scmp.eq.s32.totalorder %s28, 0
      %p139 = por %p137, %p138
      %s141 = sadd.s32 %s140, 1
      %p144 = scmp.eq.s32.totalorder %s22, 2
      %p145 = scmp.ne.s32.totalorder %s140, %s142
      %p146 = scmp.eq.s32.totalorder %s22, 0
      %p147 = por %p145, %p146
      %p148 = scmp.ne.s32.totalorder %s140, %s142
      %p149 = scmp.eq.s32.totalorder %s27, 2
      %p150 = por %p148, %p149
      %p151 = scmp.ne.s32.totalorder %s142, %s143
      %p152 = scmp.eq.s32.totalorder %s27, 0
      %p153 = por %p151, %p152
      %p154 = scmp.ne.s32.totalorder %s142, %s143
      %p155 = scmp.eq.s32.totalorder %s28, 2
      %p156 = por %p154, %p155
      %p158 = scmp.ne.s32.totalorder %s143, %s157
      %p159 = scmp.eq.s32.totalorder %s28, 0
      %p160 = por %p158, %p159
      %s162 = sadd.s32 %s161, 1
      %p165 = scmp.eq.s32.totalorder %s22, 2
      %p166 = scmp.ne.s32.totalorder %s161, %s163
      %p167 = scmp.eq.s32.totalorder %s22, 0
      %p168 = por %p166, %p167
      %p169 = scmp.ne.s32.totalorder %s161, %s163
      %p170 = scmp.eq.s32.totalorder %s27, 2
      %p171 = por %p169, %p170
      %p172 = scmp.ne.s32.totalorder %s163, %s164
      %p173 = scmp.eq.s32.totalorder %s27, 0
      %p174 = por %p172, %p173
      %p175 = scmp.ne.s32.totalorder %s163, %s164
      %p176 = scmp.eq.s32.totalorder %s28, 2
      %p177 = por %p175, %p176
      %p179 = scmp.ne.s32.totalorder %s164, %s178
      %p180 = scmp.eq.s32.totalorder %s28, 0
      %p181 = por %p179, %p180
      %s183 = sadd.s32 %s182, 1
      %p186 = scmp.eq.s32.totalorder %s22, 2
      %p187 = scmp.ne.s32.totalorder %s182, %s184
      %p188 = scmp.eq.s32.totalorder %s22, 0
      %p189 = por %p187, %p188
      %p190 = scmp.ne.s32.totalorder %s182, %s184
      %p191 = scmp.eq.s32.totalorder %s27, 2
      %p192 = por %p190, %p191
      %p193 = scmp.ne.s32.totalorder %s184, %s185
      %p194 = scmp.eq.s32.totalorder %s27, 0
      %p195 = por %p193, %p194
      %p196 = scmp.ne.s32.totalorder %s184, %s185
      %p197 = scmp.eq.s32.totalorder %s28, 2
      %p198 = por %p196, %p197
      %p200 = scmp.ne.s32.totalorder %s185, %s199
      %p201 = scmp.eq.s32.totalorder %s28, 0
      %p202 = por %p200, %p201
      %s204 = sadd.s32 %s203, 1
      %p207 = scmp.eq.s32.totalorder %s22, 2
      %p208 = scmp.ne.s32.totalorder %s203, %s205
      %p209 = scmp.eq.s32.totalorder %s22, 0
      %p210 = por %p208, %p209
      %p211 = scmp.ne.s32.totalorder %s203, %s205
      %p212 = scmp.eq.s32.totalorder %s27, 2
      %p213 = por %p211, %p212
      %p214 = scmp.ne.s32.totalorder %s205, %s206
      %p215 = scmp.eq.s32.totalorder %s27, 0
      %p216 = por %p214, %p215
      %p217 = scmp.ne.s32.totalorder %s205, %s206
      %p218 = scmp.eq.s32.totalorder %s28, 2
      %p219 = por %p217, %p218
      %p221 = scmp.ne.s32.totalorder %s206, %s220
      %p222 = scmp.eq.s32.totalorder %s28, 0
      %p223 = por %p221, %p222
      %s225 = sadd.s32 %s224, 1
      %p228 = scmp.eq.s32.totalorder %s22, 2
      %p229 = scmp.ne.s32.totalorder %s224, %s226
      %p230 = scmp.eq.s32.totalorder %s22, 0
      %p231 = por %p229, %p230
      %p232 = scmp.ne.s32.totalorder %s224, %s226
      %p233 = scmp.eq.s32.totalorder %s27, 2
      %p234 = por %p232, %p233
      %p235 = scmp.ne.s32.totalorder %s226, %s227
      %p236 = scmp.eq.s32.totalorder %s27, 0
      %p237 = por %p235, %p236
      %p238 = scmp.ne.s32.totalorder %s226, %s227
      %p239 = scmp.eq.s32.totalorder %s28, 2
      %p240 = por %p238, %p239
      %p242 = scmp.ne.s32.totalorder %s227, %s241
      %p243 = scmp.eq.s32.totalorder %s28, 0
      %p244 = por %p242, %p243
      %s245 = ssub.s32 %s22, %s29
      %p246 = scmp.eq.s32.totalorder %s245, 0
      %s248 = sadd.s32 %s247, 1
      %s249 = scalar_select %p246, %s247, %s248
      %p252 = pneg %p246
      %p253 = scmp.eq.s32.totalorder %s22, 2
      %p254 = por %p252, %p253
      %p255 = scmp.ne.s32.totalorder %s247, %s250
      %p256 = scmp.eq.s32.totalorder %s22, 0
      %p257 = por %p255, %p256
      %p258 = scmp.ne.s32.totalorder %s247, %s250
      %p259 = scmp.eq.s32.totalorder %s27, 2
      %p260 = por %p258, %p259
      %p261 = scmp.ne.s32.totalorder %s250, %s251
      %p262 = scmp.eq.s32.totalorder %s27, 0
      %p263 = por %p261, %p262
      %p264 = scmp.ne.s32.totalorder %s250, %s251
      %p265 = scmp.eq.s32.totalorder %s28, 2
      %p266 = por %p264, %p265
      %p268 = scmp.ne.s32.totalorder %s251, %s267
      %p269 = scmp.eq.s32.totalorder %s28, 0
      %p270 = por %p268, %p269
      %p271 = scmp.le.s32.totalorder 1, %s22
      %p272 = scmp.lt.s32.totalorder %s22, 4
      %p273 = pnand %p271, %p272
      %p274 = pneg %p273
      // Predicated region
      $region9: #{tpu_custom_call.1} parent=5 // pred_check
        _
      $region10: #{tpu_custom_call.1} parent=5 // pred_check_branch
        %276 = sbr.rel (%p273) target = $region12
      $region11: #{tpu_custom_call.1} parent=5 // pred_region
        %s277 = ssub.s32 %s22, 1
        // Predicated region
        $region13: #{tpu_custom_call.1} parent=11 // pred_check
          %p278 = pneg %p69
        $region14: #{tpu_custom_call.1} parent=11 // pred_check_branch
          %280 = sbr.rel (%p278) target = $region16
        $region15: #{tpu_custom_call.1} parent=11 // pred_region
          _
        $region16: #{tpu_custom_call.1} parent=11 // pred_fallthru
          _
        // Predicated region
        $region17: #{tpu_custom_call.1} parent=11 // pred_check
          %p281 = pneg %p90
        $region18: #{tpu_custom_call.1} parent=11 // pred_check_branch
          %283 = sbr.rel (%p281) target = $region20
        $region19: #{tpu_custom_call.1} parent=11 // pred_region
          _
        $region20: #{tpu_custom_call.1} parent=11 // pred_fallthru
          _
        // Predicated region
        $region21: #{tpu_custom_call.1} parent=11 // pred_check
          %p284 = pneg %p111
        $region22: #{tpu_custom_call.1} parent=11 // pred_check_branch
          %286 = sbr.rel (%p284) target = $region24
        $region23: #{tpu_custom_call.1} parent=11 // pred_region
          %s288 = ssub.s32 2048, 2048
          %289 = vsyncadd [#allocation4], %s288
          %s290 = sshll.u32 [#allocation3], 4
          %s291 = int_to_ptr.vmem [resolvable:$true] %s290
          %296 = dma.hbm_to_vmem [thread:$0]  %s3, 2048, %s291, [#allocation4], 128, 128, 8
        $region24: #{tpu_custom_call.1} parent=11 // pred_fallthru
          _
        // Predicated region
        $region25: #{tpu_custom_call.1} parent=11 // pred_check
          %p297 = pneg %p132
        $region26: #{tpu_custom_call.1} parent=11 // pred_check_branch
          %299 = sbr.rel (%p297) target = $region28
        $region27: #{tpu_custom_call.1} parent=11 // pred_region
          _
        $region28: #{tpu_custom_call.1} parent=11 // pred_fallthru
          _
        // Predicated region
        $region29: #{tpu_custom_call.1} parent=11 // pred_check
          %p300 = pneg %p153
        $region30: #{tpu_custom_call.1} parent=11 // pred_check_branch
          %302 = sbr.rel (%p300) target = $region32
        $region31: #{tpu_custom_call.1} parent=11 // pred_region
          %s304 = ssub.s32 32, 32
          %305 = vsyncadd [#allocation7], %s304
          %s307 = sshll.u32 [#allocation6], 4
          %s308 = int_to_ptr.vmem [resolvable:$true] %s307
          %310 = dma.hbm_to_vmem [thread:$0]  %s5, 32, %s308, [#allocation7]
        $region32: #{tpu_custom_call.1} parent=11 // pred_fallthru
          _
        // Predicated region
        $region33: #{tpu_custom_call.1} parent=11 // pred_check
          %p311 = pneg %p174
        $region34: #{tpu_custom_call.1} parent=11 // pred_check_branch
          %313 = sbr.rel (%p311) target = $region36
        $region35: #{tpu_custom_call.1} parent=11 // pred_region
          %s315 = ssub.s32 4096, 4096
          %316 = vsyncadd [#allocation7], %s315
          %s317 = sshll.u32 [#allocation8], 4
          %s318 = int_to_ptr.vmem [resolvable:$true] %s317
          %323 = dma.hbm_to_vmem [thread:$0]  %s6, 4096, %s318, [#allocation7], 128, 128, 8
        $region36: #{tpu_custom_call.1} parent=11 // pred_fallthru
          _
        // Predicated region
        $region37: #{tpu_custom_call.1} parent=11 // pred_check
          %p324 = pneg %p195
        $region38: #{tpu_custom_call.1} parent=11 // pred_check_branch
          %326 = sbr.rel (%p324) target = $region40
        $region39: #{tpu_custom_call.1} parent=11 // pred_region
          _
        $region40: #{tpu_custom_call.1} parent=11 // pred_fallthru
          _
        // Predicated region
        $region41: #{tpu_custom_call.1} parent=11 // pred_check
          %p327 = pneg %p216
        $region42: #{tpu_custom_call.1} parent=11 // pred_check_branch
          %329 = sbr.rel (%p327) target = $region44
        $region43: #{tpu_custom_call.1} parent=11 // pred_region
          _
        $region44: #{tpu_custom_call.1} parent=11 // pred_fallthru
          _
        // Predicated region
        $region45: #{tpu_custom_call.1} parent=11 // pred_check
          %p330 = pneg %p237
        $region46: #{tpu_custom_call.1} parent=11 // pred_check_branch
          %332 = sbr.rel (%p330) target = $region48
        $region47: #{tpu_custom_call.1} parent=11 // pred_region
          _
        $region48: #{tpu_custom_call.1} parent=11 // pred_fallthru
          _
      $region12: #{tpu_custom_call.1} parent=5 // pred_fallthru
        _
      %p333 = scmp.lt.s32.totalorder %s22, 3
      // Predicated region
      $region49: #{tpu_custom_call.1} parent=5 // pred_check
        %p334 = pneg %p333
      $region50: #{tpu_custom_call.1} parent=5 // pred_check_branch
        %336 = sbr.rel (%p334) target = $region52
      $region51: #{tpu_custom_call.1} parent=5 // pred_region
        // Predicated region
        $region53: #{tpu_custom_call.1} parent=51 // pred_check
          %p337 = pneg %p42
        $region54: #{tpu_custom_call.1} parent=51 // pred_check_branch
          %339 = sbr.rel (%p337) target = $region56
        $region55: #{tpu_custom_call.1} parent=51 // pred_region
          %p340 = scmp.lt.s32.totalorder %s22, 2
          %s341 = scalar_select %p340, %s22, 2
          %s342 = smul.addr %s341, 8
          %s343 = scalar_lea.vmem %s0, %s342
        $region56: #{tpu_custom_call.1} parent=51 // pred_fallthru
          _
      $region52: #{tpu_custom_call.1} parent=5 // pred_fallthru
        _
      %p344 = scmp.le.s32.totalorder 1, %s22
      %p345 = scmp.lt.s32.totalorder %s22, 4
      %p346 = pnand %p344, %p345
      %p347 = pneg %p346
      // Predicated region
      $region57: #{tpu_custom_call.1} parent=5 // pred_check
        _
      $region58: #{tpu_custom_call.1} parent=5 // pred_check_branch
        %349 = sbr.rel (%p346) target = $region60
      $region59: #{tpu_custom_call.1} parent=5 // pred_region
        %s350 = ssub.s32 %s22, 1
        // Predicated region
        $region61: #{tpu_custom_call.1} parent=59 // pred_check
          %p351 = pneg %p111
        $region62: #{tpu_custom_call.1} parent=59 // pred_check_branch
          %353 = sbr.rel (%p351) target = $region64
        $region63: #{tpu_custom_call.1} parent=59 // pred_region
          %354 = dma.done [#allocation4], 2048
        $region64: #{tpu_custom_call.1} parent=59 // pred_fallthru
          _
        // Predicated region
        $region65: #{tpu_custom_call.1} parent=59 // pred_check
          %p355 = pneg %p153
        $region66: #{tpu_custom_call.1} parent=59 // pred_check_branch
          %357 = sbr.rel (%p355) target = $region68
        $region67: #{tpu_custom_call.1} parent=59 // pred_region
          %358 = dma.done [#allocation7], 32
        $region68: #{tpu_custom_call.1} parent=59 // pred_fallthru
          _
        // Predicated region
        $region69: #{tpu_custom_call.1} parent=59 // pred_check
          %p359 = pneg %p174
        $region70: #{tpu_custom_call.1} parent=59 // pred_check_branch
          %361 = sbr.rel (%p359) target = $region72
        $region71: #{tpu_custom_call.1} parent=59 // pred_region
          %362 = dma.done [#allocation7], 4096
        $region72: #{tpu_custom_call.1} parent=59 // pred_fallthru
          _
        %p363 = scmp.lt.s32.totalorder %s27, 2
        %s364 = scalar_select %p363, %s27, 2
        %s365 = smul.addr %s364, 8
        %s366 = scalar_lea.vmem %s0, %s365
        %p367 = pneg %p48
        %p368 = pneg %p45
        %p369 = pneg %p69
        %p370 = pneg %p66
        %p371 = pneg %p90
        %p372 = pneg %p87
        %p373 = pneg %p111
        %p374 = pneg %p108
        %p375 = pneg %p132
        %p376 = pneg %p129
        %p377 = pneg %p153
        %p378 = pneg %p150
        %p379 = pneg %p174
        %p380 = pneg %p171
        %p381 = pneg %p195
        %p382 = pneg %p192
        %p383 = pneg %p216
        %p384 = pneg %p213
        %p385 = pneg %p237
        %p386 = pneg %p234
        %p387 = pneg %p263
        %p388 = pneg %p260
        %s389 = sand.u32 %s250, 1
        %s390 = scalar_lea.sflag [#allocation5], %s389
        %s391 = sand.u32 %s250, 1
        %s392 = smul.addr %s391, 8
        %s393 = scalar_lea.vmem [#allocation9], %s392
        %p394 = scmp.lt.s32.totalorder %s27, 2
        %s395 = scalar_select %p394, %s27, 2
        %s396 = smul.addr %s395, 8
        %s397 = scalar_lea.vmem %s0, %s396
        %v399 = vld [vmem:[%s397] sm:$0xff]
        %v400 = vcvt.s32.f32 %v399
        %v401 = vld [vmem:[%s1] sm:$0xff]
        %v402 = vld [vmem:[%s1 + $0x8] sm:$0xff]
        %v403 = vld [vmem:[%s1 + $0x10] sm:$0x1]
        %v404 = vld [vmem:[%s1 + $0x18] sm:$0x1]
        %vm405 = vcmask 72704
        %v407 = vsel %vm405, %v400, 0
        %vm409 = vcmask 1040384
        %v411 = vsel %vm409, %v403, 0
        %v414 = vsel %vm409, %v404, 0
        %416 = vmatprep.subr.mxu0 0.0
        %417 = vmatpush1.msra.mxu0 0.0
        %418 = vmatprep.subr.mxu0 0.0
        %419 = vmatpush1.msra.mxu0 0.0
        %420 = vmatprep.subr.mxu0 0.0
        %421 = vmatpush1.msra.mxu0 0.0
        %422 = vmatprep.subr.mxu0 0.0
        %423 = vmatpush1.msra.mxu0 0.0
        %424 = vmatprep.subr.mxu0 0.0
        %425 = vmatpush1.msra.mxu0 0.0
        %426 = vmatprep.subr.mxu0 0.0
        %427 = vmatpush1.msra.mxu0 0.0
        %428 = vmatprep.subr.mxu0 0.0
        %429 = vmatpush1.msra.mxu0 0.0
        %430 = vmatprep.subr.mxu0 0.0
        %431 = vmatpush1.msra.mxu0 0.0
        %432 = vmatprep.subr.mxu0 0.0
        %433 = vmatpush1.msra.mxu0 0.0
        %434 = vmatprep.subr.mxu0 0.0
        %435 = vmatpush1.msra.mxu0 0.0
        %436 = vmatprep.subr.mxu0 0.0
        %437 = vmatpush1.msra.mxu0 0.0
        %438 = vmatprep.subr.mxu0 0.0
        %439 = vmatpush1.msra.mxu0 0.0
        %440 = vmatprep.subr.mxu0 0.0
        %441 = vmatpush1.msra.mxu0 0.0
        %442 = vmatprep.subr.mxu0 0.0
        %443 = vmatpush1.msra.mxu0 0.0
        %444 = vmatprep.subr.mxu0 %v414
        %445 = vmatpush1.msra.mxu0 %v411
        %446 = vmatprep.subr.mxu0 %v402
        %447 = vmatpush1.msra.mxu0 %v401
        %448 = vmatprep.subr.mxu0 0.0
        %449 = vmatpush2.msra.mxu0 0.0
        %450 = vmatprep.subr.mxu0 0.0
        %451 = vmatpush2.msra.mxu0 0.0
        %452 = vmatprep.subr.mxu0 0.0
        %453 = vmatpush2.msra.mxu0 0.0
        %454 = vmatprep.subr.mxu0 0.0
        %455 = vmatpush2.msra.mxu0 0.0
        %456 = vmatprep.subr.mxu0 0.0
        %457 = vmatpush2.msra.mxu0 0.0
        %458 = vmatprep.subr.mxu0 0.0
        %459 = vmatpush2.msra.mxu0 0.0
        %460 = vmatprep.subr.mxu0 0.0
        %461 = vmatpush2.msra.mxu0 0.0
        %462 = vmatprep.subr.mxu0 0.0
        %463 = vmatpush2.msra.mxu0 0.0
        %464 = vmatprep.subr.mxu0 0.0
        %465 = vmatpush2.msra.mxu0 0.0
        %466 = vmatprep.subr.mxu0 0.0
        %467 = vmatpush2.msra.mxu0 0.0
        %468 = vmatprep.subr.mxu0 0.0
        %469 = vmatpush2.msra.mxu0 0.0
        %470 = vmatprep.subr.mxu0 0.0
        %471 = vmatpush2.msra.mxu0 0.0
        %472 = vmatprep.subr.mxu0 0.0
        %473 = vmatpush2.msra.mxu0 0.0
        %474 = vmatprep.subr.mxu0 0.0
        %475 = vmatpush2.msra.mxu0 0.0
        %476 = vmatprep.subr.mxu0 0.0
        %477 = vmatpush2.msra.mxu0 0.0
        %478 = vmatprep.subr.mxu0 0.0
        %479 = vmatpush2.msra.mxu0 0.0
        %480 = vmatprep.mubr.f32.mxu0 0.0
        %481 = vmatmul.mubr.f32.gmra.mxu0 %v407
        %v482 = vpop.f32.mrf.mxu0
        %v483 = vadd.f32 0.0, %v482
        %v484 = vpop.f32.mrf.mxu0
        %v485 = vadd.f32 0.0, %v484
        %486 = vdwg.mxu0
        %v487 = vld [vmem:[%s2] sm:$0x3]
        %v489 = vlaneseq
        %v490 = vshrl.u32 %v489, 7
        %v491 = vsub.s32 0, %v490
        %v492 = vrot.slane %v487, %v491
        %v493 = vlaneseq
        %v494 = vshrl.u32 %v493, 7
        %v495 = vsub.s32 1, %v494
        %v496 = vrot.slane %v487, %v495
        %vm499 = vcmp.eq.f32.partialorder %v483, %v492
        %vm500 = vcmp.eq.f32.partialorder %v485, %v496
        %v501 = vsel %vm499, 1, 0
        %v502 = vsel %vm500, 1, 0
        %v503 = vcvt.s32.f32 %v501
        %v504 = vcvt.s32.f32 %v502
        %v505 = vpack.c.bf16 %v503, %v503
        %v506 = vpack.c.bf16 %v504, %v504
        %v507 = vld [vmem:[#allocation3] sm:$0xff]
        %v508 = vld [vmem:[#allocation3 + $0x8] sm:$0xff]
        %v509 = vld [vmem:[#allocation3 + $0x10] sm:$0xff]
        %v510 = vld [vmem:[#allocation3 + $0x18] sm:$0xff]
        %v511 = vld [vmem:[#allocation3 + $0x20] sm:$0xff]
        %v512 = vld [vmem:[#allocation3 + $0x28] sm:$0xff]
        %v513 = vld [vmem:[#allocation3 + $0x30] sm:$0xff]
        %v514 = vld [vmem:[#allocation3 + $0x38] sm:$0xff]
        %v515 = vld [vmem:[#allocation3 + $0x40] sm:$0xff]
        %v516 = vld [vmem:[#allocation3 + $0x48] sm:$0xff]
        %v517 = vld [vmem:[#allocation3 + $0x50] sm:$0xff]
        %v518 = vld [vmem:[#allocation3 + $0x58] sm:$0xff]
        %v519 = vld [vmem:[#allocation3 + $0x60] sm:$0xff]
        %v520 = vld [vmem:[#allocation3 + $0x68] sm:$0xff]
        %v521 = vld [vmem:[#allocation3 + $0x70] sm:$0xff]
        %v522 = vld [vmem:[#allocation3 + $0x78] sm:$0xff]
        %v539 = vunpack.c.l.b16 %v507
        %v540 = vunpack.c.h.b16 %v507
        %v541 = vunpack.c.l.b16 %v508
        %v542 = vunpack.c.h.b16 %v508
        %v543 = vunpack.c.l.b16 %v509
        %v544 = vunpack.c.h.b16 %v509
        %v545 = vunpack.c.l.b16 %v510
        %v546 = vunpack.c.h.b16 %v510
        %v547 = vunpack.c.l.b16 %v511
        %v548 = vunpack.c.h.b16 %v511
        %v549 = vunpack.c.l.b16 %v512
        %v550 = vunpack.c.h.b16 %v512
        %v551 = vunpack.c.l.b16 %v513
        %v552 = vunpack.c.h.b16 %v513
        %v553 = vunpack.c.l.b16 %v514
        %v554 = vunpack.c.h.b16 %v514
        %v555 = vunpack.c.l.b16 %v515
        %v556 = vunpack.c.h.b16 %v515
        %v557 = vunpack.c.l.b16 %v516
        %v558 = vunpack.c.h.b16 %v516
        %v559 = vunpack.c.l.b16 %v517
        %v560 = vunpack.c.h.b16 %v517
        %v561 = vunpack.c.l.b16 %v518
        %v562 = vunpack.c.h.b16 %v518
        %v563 = vunpack.c.l.b16 %v519
        %v564 = vunpack.c.h.b16 %v519
        %v565 = vunpack.c.l.b16 %v520
        %v566 = vunpack.c.h.b16 %v520
        %v567 = vunpack.c.l.b16 %v521
        %v568 = vunpack.c.h.b16 %v521
        %v569 = vunpack.c.l.b16 %v522
        %v570 = vunpack.c.h.b16 %v522
        %v571 = vpack.c.b16 %v541, %v539
        %v572 = vpack.c.b16 %v542, %v540
        %v573 = vpack.c.b16 %v545, %v543
        %v574 = vpack.c.b16 %v546, %v544
        %v575 = vpack.c.b16 %v549, %v547
        %v576 = vpack.c.b16 %v550, %v548
        %v577 = vpack.c.b16 %v553, %v551
        %v578 = vpack.c.b16 %v554, %v552
        %v579 = vpack.c.b16 %v557, %v555
        %v580 = vpack.c.b16 %v558, %v556
        %v581 = vpack.c.b16 %v561, %v559
        %v582 = vpack.c.b16 %v562, %v560
        %v583 = vpack.c.b16 %v565, %v563
        %v584 = vpack.c.b16 %v566, %v564
        %v585 = vpack.c.b16 %v569, %v567
        %v586 = vpack.c.b16 %v570, %v568
        %603 = vmatprep.subr.bf16.mxu0 %v586
        %604 = vmatpush1.bf16.msra.mxu0 %v585
        %605 = vmatprep.subr.bf16.mxu0 %v584
        %606 = vmatpush1.bf16.msra.mxu0 %v583
        %607 = vmatprep.subr.bf16.mxu0 %v582
        %608 = vmatpush1.bf16.msra.mxu0 %v581
        %609 = vmatprep.subr.bf16.mxu0 %v580
        %610 = vmatpush1.bf16.msra.mxu0 %v579
        %611 = vmatprep.subr.bf16.mxu0 %v578
        %612 = vmatpush1.bf16.msra.mxu0 %v577
        %613 = vmatprep.subr.bf16.mxu0 %v576
        %614 = vmatpush1.bf16.msra.mxu0 %v575
        %615 = vmatprep.subr.bf16.mxu0 %v574
        %616 = vmatpush1.bf16.msra.mxu0 %v573
        %617 = vmatprep.subr.bf16.mxu0 %v572
        %618 = vmatpush1.bf16.msra.mxu0 %v571
        %619 = vmatprep.subr.bf16.mxu0 0
        %620 = vmatpush2.bf16.msra.mxu0 0
        %621 = vmatprep.subr.bf16.mxu0 0
        %622 = vmatpush2.bf16.msra.mxu0 0
        %623 = vmatprep.subr.bf16.mxu0 0
        %624 = vmatpush2.bf16.msra.mxu0 0
        %625 = vmatprep.subr.bf16.mxu0 0
        %626 = vmatpush2.bf16.msra.mxu0 0
        %627 = vmatprep.subr.bf16.mxu0 0
        %628 = vmatpush2.bf16.msra.mxu0 0
        %629 = vmatprep.subr.bf16.mxu0 0
        %630 = vmatpush2.bf16.msra.mxu0 0
        %631 = vmatprep.subr.bf16.mxu0 0
        %632 = vmatpush2.bf16.msra.mxu0 0
        %633 = vmatprep.subr.bf16.mxu0 0
        %634 = vmatpush2.bf16.msra.mxu0 0
        %635 = vmatprep.mubr.bf16.mxu0 0
        %636 = vmatmul.mubr.bf16.gmra.mxu0 %v505
        %v637 = vpop.f32.mrf.mxu0
        %v638 = vadd.f32 0.0, %v637
        %v639 = vpop.f32.mrf.mxu0
        %v640 = vadd.f32 0.0, %v639
        %v641 = vpop.f32.mrf.mxu0
        %v642 = vpop.f32.mrf.mxu0
        %643 = vdwg.mxu0
        %v644 = vld [vmem:[%s4] sm:$0xff]
        %v645 = vld [vmem:[%s4 + $0x8] sm:$0xff]
        %v646 = vld [vmem:[%s4 + $0x10] sm:$0xff]
        %v647 = vld [vmem:[%s4 + $0x18] sm:$0xff]
        %v648 = vld [vmem:[%s4 + $0x20] sm:$0xff]
        %v649 = vld [vmem:[%s4 + $0x28] sm:$0xff]
        %v650 = vld [vmem:[%s4 + $0x30] sm:$0xff]
        %v651 = vld [vmem:[%s4 + $0x38] sm:$0xff]
        %v652 = vld [vmem:[%s4 + $0x40] sm:$0xff]
        %v653 = vld [vmem:[%s4 + $0x48] sm:$0xff]
        %v654 = vld [vmem:[%s4 + $0x50] sm:$0xff]
        %v655 = vld [vmem:[%s4 + $0x58] sm:$0xff]
        %v656 = vld [vmem:[%s4 + $0x60] sm:$0xff]
        %v657 = vld [vmem:[%s4 + $0x68] sm:$0xff]
        %v658 = vld [vmem:[%s4 + $0x70] sm:$0xff]
        %v659 = vld [vmem:[%s4 + $0x78] sm:$0xff]
        %v660 = vld [vmem:[%s4 + $0x80] sm:$0xff]
        %v661 = vld [vmem:[%s4 + $0x88] sm:$0xff]
        %v662 = vld [vmem:[#allocation6] sm:$0x3]
        %v664 = vlaneseq
        %v665 = vshrl.u32 %v664, 7
        %v666 = vsub.s32 0, %v665
        %v667 = vrot.slane %v662, %v666
        %v668 = vlaneseq
        %v669 = vshrl.u32 %v668, 7
        %v670 = vsub.s32 1, %v669
        %v671 = vrot.slane %v662, %v670
        %v692 = vunpack.c.l.b16 %v644
        %v693 = vunpack.c.h.b16 %v644
        %v694 = vunpack.c.l.b16 %v645
        %v695 = vunpack.c.h.b16 %v645
        %v696 = vunpack.c.l.b16 %v646
        %v697 = vunpack.c.h.b16 %v646
        %v698 = vunpack.c.l.b16 %v647
        %v699 = vunpack.c.h.b16 %v647
        %v700 = vunpack.c.l.b16 %v648
        %v701 = vunpack.c.h.b16 %v648
        %v702 = vunpack.c.l.b16 %v649
        %v703 = vunpack.c.h.b16 %v649
        %v704 = vunpack.c.l.b16 %v650
        %v705 = vunpack.c.h.b16 %v650
        %v706 = vunpack.c.l.b16 %v651
        %v707 = vunpack.c.h.b16 %v651
        %v708 = vunpack.c.l.b16 %v652
        %v709 = vunpack.c.h.b16 %v652
        %v710 = vunpack.c.l.b16 %v653
        %v711 = vunpack.c.h.b16 %v653
        %v712 = vunpack.c.l.b16 %v654
        %v713 = vunpack.c.h.b16 %v654
        %v714 = vunpack.c.l.b16 %v655
        %v715 = vunpack.c.h.b16 %v655
        %v716 = vunpack.c.l.b16 %v656
        %v717 = vunpack.c.h.b16 %v656
        %v718 = vunpack.c.l.b16 %v657
        %v719 = vunpack.c.h.b16 %v657
        %v720 = vunpack.c.l.b16 %v658
        %v721 = vunpack.c.h.b16 %v658
        %v722 = vunpack.c.l.b16 %v659
        %v723 = vunpack.c.h.b16 %v659
        %v724 = vunpack.c.l.b16 %v660
        %v725 = vunpack.c.h.b16 %v660
        %v726 = vunpack.c.l.b16 %v661
        %v727 = vunpack.c.h.b16 %v661
        %v728 = vpack.c.b16 %v694, %v692
        %v729 = vpack.c.b16 %v695, %v693
        %v730 = vpack.c.b16 %v698, %v696
        %v731 = vpack.c.b16 %v699, %v697
        %v732 = vpack.c.b16 %v702, %v700
        %v733 = vpack.c.b16 %v703, %v701
        %v734 = vpack.c.b16 %v706, %v704
        %v735 = vpack.c.b16 %v707, %v705
        %v736 = vpack.c.b16 %v710, %v708
        %v737 = vpack.c.b16 %v711, %v709
        %v738 = vpack.c.b16 %v714, %v712
        %v739 = vpack.c.b16 %v715, %v713
        %v740 = vpack.c.b16 %v718, %v716
        %v741 = vpack.c.b16 %v719, %v717
        %v742 = vpack.c.b16 %v722, %v720
        %v743 = vpack.c.b16 %v723, %v721
        %v744 = vpack.c.b16 %v726, %v724
        %v745 = vpack.c.b16 %v727, %v725
        %vm764 = vcmask 130048
        %v766 = vsel %vm764, %v506, 0
        %768 = vmatprep.subr.bf16.mxu0 %v743
        %769 = vmatpush1.bf16.msra.mxu0 %v742
        %770 = vmatprep.subr.bf16.mxu0 %v741
        %771 = vmatpush1.bf16.msra.mxu0 %v740
        %772 = vmatprep.subr.bf16.mxu0 %v739
        %773 = vmatpush1.bf16.msra.mxu0 %v738
        %774 = vmatprep.subr.bf16.mxu0 %v737
        %775 = vmatpush1.bf16.msra.mxu0 %v736
        %776 = vmatprep.subr.bf16.mxu0 %v735
        %777 = vmatpush1.bf16.msra.mxu0 %v734
        %778 = vmatprep.subr.bf16.mxu0 %v733
        %779 = vmatpush1.bf16.msra.mxu0 %v732
        %780 = vmatprep.subr.bf16.mxu0 %v731
        %781 = vmatpush1.bf16.msra.mxu0 %v730
        %782 = vmatprep.subr.bf16.mxu0 %v729
        %783 = vmatpush1.bf16.msra.mxu0 %v728
        %784 = vmatprep.subr.bf16.mxu0 0
        %785 = vmatpush2.bf16.msra.mxu0 0
        %786 = vmatprep.subr.bf16.mxu0 0
        %787 = vmatpush2.bf16.msra.mxu0 0
        %788 = vmatprep.subr.bf16.mxu0 0
        %789 = vmatpush2.bf16.msra.mxu0 0
        %790 = vmatprep.subr.bf16.mxu0 0
        %791 = vmatpush2.bf16.msra.mxu0 0
        %792 = vmatprep.subr.bf16.mxu0 0
        %793 = vmatpush2.bf16.msra.mxu0 0
        %794 = vmatprep.subr.bf16.mxu0 0
        %795 = vmatpush2.bf16.msra.mxu0 0
        %796 = vmatprep.subr.bf16.mxu0 0
        %797 = vmatpush2.bf16.msra.mxu0 0
        %798 = vmatprep.subr.bf16.mxu0 %v745
        %799 = vmatpush2.bf16.msra.mxu0 %v744
        %800 = vmatprep.mubr.bf16.mxu0 %v766
        %801 = vmatmul.mubr.bf16.gmra.mxu0 %v505
        %v802 = vpop.f32.mrf.mxu0
        %v803 = vadd.f32 %v667, %v802
        %v804 = vpop.f32.mrf.mxu0
        %v805 = vadd.f32 %v671, %v804
        %v806 = vpop.f32.mrf.mxu0
        %v807 = vpop.f32.mrf.mxu0
        %808 = vdwg.mxu0
        %v809 = vmax.f32 %v803, 0.0
        %v810 = vmax.f32 %v805, 0.0
        %v811 = vpack.c.bf16 %v809, %v809
        %v812 = vpack.c.bf16 %v810, %v810
        %v813 = vld [vmem:[#allocation8] sm:$0xff]
        %v814 = vld [vmem:[#allocation8 + $0x8] sm:$0xff]
        %v815 = vld [vmem:[#allocation8 + $0x10] sm:$0xff]
        %v816 = vld [vmem:[#allocation8 + $0x18] sm:$0xff]
        %v817 = vld [vmem:[#allocation8 + $0x20] sm:$0xff]
        %v818 = vld [vmem:[#allocation8 + $0x28] sm:$0xff]
        %v819 = vld [vmem:[#allocation8 + $0x30] sm:$0xff]
        %v820 = vld [vmem:[#allocation8 + $0x38] sm:$0xff]
        %v821 = vld [vmem:[#allocation8 + $0x40] sm:$0xff]
        %v822 = vld [vmem:[#allocation8 + $0x48] sm:$0xff]
        %v823 = vld [vmem:[#allocation8 + $0x50] sm:$0xff]
        %v824 = vld [vmem:[#allocation8 + $0x58] sm:$0xff]
        %v825 = vld [vmem:[#allocation8 + $0x60] sm:$0xff]
        %v826 = vld [vmem:[#allocation8 + $0x68] sm:$0xff]
        %v827 = vld [vmem:[#allocation8 + $0x70] sm:$0xff]
        %v828 = vld [vmem:[#allocation8 + $0x78] sm:$0xff]
        %v829 = vld [vmem:[#allocation8 + $0x80] sm:$0xff]
        %v830 = vld [vmem:[#allocation8 + $0x88] sm:$0xff]
        %v831 = vld [vmem:[#allocation8 + $0x90] sm:$0xff]
        %v832 = vld [vmem:[#allocation8 + $0x98] sm:$0xff]
        %v833 = vld [vmem:[#allocation8 + $0xa0] sm:$0xff]
        %v834 = vld [vmem:[#allocation8 + $0xa8] sm:$0xff]
        %v835 = vld [vmem:[#allocation8 + $0xb0] sm:$0xff]
        %v836 = vld [vmem:[#allocation8 + $0xb8] sm:$0xff]
        %v837 = vld [vmem:[#allocation8 + $0xc0] sm:$0xff]
        %v838 = vld [vmem:[#allocation8 + $0xc8] sm:$0xff]
        %v839 = vld [vmem:[#allocation8 + $0xd0] sm:$0xff]
        %v840 = vld [vmem:[#allocation8 + $0xd8] sm:$0xff]
        %v841 = vld [vmem:[#allocation8 + $0xe0] sm:$0xff]
        %v842 = vld [vmem:[#allocation8 + $0xe8] sm:$0xff]
        %v843 = vld [vmem:[#allocation8 + $0xf0] sm:$0xff]
        %v844 = vld [vmem:[#allocation8 + $0xf8] sm:$0xff]
        %v845 = vld [vmem:[%s7] sm:$0x3]
        %v847 = vlaneseq
        %v848 = vshrl.u32 %v847, 7
        %v849 = vsub.s32 0, %v848
        %v850 = vrot.slane %v845, %v849
        %v851 = vlaneseq
        %v852 = vshrl.u32 %v851, 7
        %v853 = vsub.s32 1, %v852
        %v854 = vrot.slane %v845, %v853
        %v889 = vunpack.c.l.b16 %v813
        %v890 = vunpack.c.h.b16 %v813
        %v891 = vunpack.c.l.b16 %v814
        %v892 = vunpack.c.h.b16 %v814
        %v893 = vunpack.c.l.b16 %v815
        %v894 = vunpack.c.h.b16 %v815
        %v895 = vunpack.c.l.b16 %v816
        %v896 = vunpack.c.h.b16 %v816
        %v897 = vunpack.c.l.b16 %v817
        %v898 = vunpack.c.h.b16 %v817
        %v899 = vunpack.c.l.b16 %v818
        %v900 = vunpack.c.h.b16 %v818
        %v901 = vunpack.c.l.b16 %v819
        %v902 = vunpack.c.h.b16 %v819
        %v903 = vunpack.c.l.b16 %v820
        %v904 = vunpack.c.h.b16 %v820
        %v905 = vunpack.c.l.b16 %v821
        %v906 = vunpack.c.h.b16 %v821
        %v907 = vunpack.c.l.b16 %v822
        %v908 = vunpack.c.h.b16 %v822
        %v909 = vunpack.c.l.b16 %v823
        %v910 = vunpack.c.h.b16 %v823
        %v911 = vunpack.c.l.b16 %v824
        %v912 = vunpack.c.h.b16 %v824
        %v913 = vunpack.c.l.b16 %v825
        %v914 = vunpack.c.h.b16 %v825
        %v915 = vunpack.c.l.b16 %v826
        %v916 = vunpack.c.h.b16 %v826
        %v917 = vunpack.c.l.b16 %v827
        %v918 = vunpack.c.h.b16 %v827
        %v919 = vunpack.c.l.b16 %v828
        %v920 = vunpack.c.h.b16 %v828
        %v921 = vunpack.c.l.b16 %v829
        %v922 = vunpack.c.h.b16 %v829
        %v923 = vunpack.c.l.b16 %v830
        %v924 = vunpack.c.h.b16 %v830
        %v925 = vunpack.c.l.b16 %v831
        %v926 = vunpack.c.h.b16 %v831
        %v927 = vunpack.c.l.b16 %v832
        %v928 = vunpack.c.h.b16 %v832
        %v929 = vunpack.c.l.b16 %v833
        %v930 = vunpack.c.h.b16 %v833
        %v931 = vunpack.c.l.b16 %v834
        %v932 = vunpack.c.h.b16 %v834
        %v933 = vunpack.c.l.b16 %v835
        %v934 = vunpack.c.h.b16 %v835
        %v935 = vunpack.c.l.b16 %v836
        %v936 = vunpack.c.h.b16 %v836
        %v937 = vunpack.c.l.b16 %v837
        %v938 = vunpack.c.h.b16 %v837
        %v939 = vunpack.c.l.b16 %v838
        %v940 = vunpack.c.h.b16 %v838
        %v941 = vunpack.c.l.b16 %v839
        %v942 = vunpack.c.h.b16 %v839
        %v943 = vunpack.c.l.b16 %v840
        %v944 = vunpack.c.h.b16 %v840
        %v945 = vunpack.c.l.b16 %v841
        %v946 = vunpack.c.h.b16 %v841
        %v947 = vunpack.c.l.b16 %v842
        %v948 = vunpack.c.h.b16 %v842
        %v949 = vunpack.c.l.b16 %v843
        %v950 = vunpack.c.h.b16 %v843
        %v951 = vunpack.c.l.b16 %v844
        %v952 = vunpack.c.h.b16 %v844
        %v953 = vpack.c.b16 %v891, %v889
        %v954 = vpack.c.b16 %v892, %v890
        %v955 = vpack.c.b16 %v895, %v893
        %v956 = vpack.c.b16 %v896, %v894
        %v957 = vpack.c.b16 %v899, %v897
        %v958 = vpack.c.b16 %v900, %v898
        %v959 = vpack.c.b16 %v903, %v901
        %v960 = vpack.c.b16 %v904, %v902
        %v961 = vpack.c.b16 %v907, %v905
        %v962 = vpack.c.b16 %v908, %v906
        %v963 = vpack.c.b16 %v911, %v909
        %v964 = vpack.c.b16 %v912, %v910
        %v965 = vpack.c.b16 %v915, %v913
        %v966 = vpack.c.b16 %v916, %v914
        %v967 = vpack.c.b16 %v919, %v917
        %v968 = vpack.c.b16 %v920, %v918
        %v969 = vpack.c.b16 %v923, %v921
        %v970 = vpack.c.b16 %v924, %v922
        %v971 = vpack.c.b16 %v927, %v925
        %v972 = vpack.c.b16 %v928, %v926
        %v973 = vpack.c.b16 %v931, %v929
        %v974 = vpack.c.b16 %v932, %v930
        %v975 = vpack.c.b16 %v935, %v933
        %v976 = vpack.c.b16 %v936, %v934
        %v977 = vpack.c.b16 %v939, %v937
        %v978 = vpack.c.b16 %v940, %v938
        %v979 = vpack.c.b16 %v943, %v941
        %v980 = vpack.c.b16 %v944, %v942
        %v981 = vpack.c.b16 %v947, %v945
        %v982 = vpack.c.b16 %v948, %v946
        %v983 = vpack.c.b16 %v951, %v949
        %v984 = vpack.c.b16 %v952, %v950
        %1017 = vmatprep.subr.bf16.mxu0 %v968
        %1018 = vmatpush1.bf16.msra.mxu0 %v967
        %1019 = vmatprep.subr.bf16.mxu0 %v966
        %1020 = vmatpush1.bf16.msra.mxu0 %v965
        %1021 = vmatprep.subr.bf16.mxu0 %v964
        %1022 = vmatpush1.bf16.msra.mxu0 %v963
        %1023 = vmatprep.subr.bf16.mxu0 %v962
        %1024 = vmatpush1.bf16.msra.mxu0 %v961
        %1025 = vmatprep.subr.bf16.mxu0 %v960
        %1026 = vmatpush1.bf16.msra.mxu0 %v959
        %1027 = vmatprep.subr.bf16.mxu0 %v958
        %1028 = vmatpush1.bf16.msra.mxu0 %v957
        %1029 = vmatprep.subr.bf16.mxu0 %v956
        %1030 = vmatpush1.bf16.msra.mxu0 %v955
        %1031 = vmatprep.subr.bf16.mxu0 %v954
        %1032 = vmatpush1.bf16.msra.mxu0 %v953
        %1033 = vmatprep.subr.bf16.mxu0 %v984
        %1034 = vmatpush2.bf16.msra.mxu0 %v983
        %1035 = vmatprep.subr.bf16.mxu0 %v982
        %1036 = vmatpush2.bf16.msra.mxu0 %v981
        %1037 = vmatprep.subr.bf16.mxu0 %v980
        %1038 = vmatpush2.bf16.msra.mxu0 %v979
        %1039 = vmatprep.subr.bf16.mxu0 %v978
        %1040 = vmatpush2.bf16.msra.mxu0 %v977
        %1041 = vmatprep.subr.bf16.mxu0 %v976
        %1042 = vmatpush2.bf16.msra.mxu0 %v975
        %1043 = vmatprep.subr.bf16.mxu0 %v974
        %1044 = vmatpush2.bf16.msra.mxu0 %v973
        %1045 = vmatprep.subr.bf16.mxu0 %v972
        %1046 = vmatpush2.bf16.msra.mxu0 %v971
        %1047 = vmatprep.subr.bf16.mxu0 %v970
        %1048 = vmatpush2.bf16.msra.mxu0 %v969
        %1049 = vmatprep.mubr.bf16.mxu0 %v812
        %1050 = vmatmul.mubr.bf16.gmra.mxu0 %v811
        %v1051 = vpop.f32.mrf.mxu0
        %v1052 = vadd.f32 %v850, %v1051
        %v1053 = vpop.f32.mrf.mxu0
        %v1054 = vadd.f32 %v854, %v1053
        %v1055 = vpop.f32.mrf.mxu0
        %v1056 = vpop.f32.mrf.mxu0
        %1057 = vdwg.mxu0
        %v1058 = vmax.f32 %v1052, 0.0
        %v1059 = vmax.f32 %v1054, 0.0
        %v1060 = vpack.c.bf16 %v1058, %v1058
        %v1061 = vpack.c.bf16 %v1059, %v1059
        %v1062 = vld [vmem:[%s8] sm:$0xf]
        %v1063 = vld [vmem:[%s8 + $0x4] sm:$0xf]
        %v1064 = vld [vmem:[%s8 + $0x8] sm:$0xf]
        %v1065 = vld [vmem:[%s8 + $0xc] sm:$0xf]
        %v1066 = vld [vmem:[%s8 + $0x10] sm:$0xf]
        %v1067 = vld [vmem:[%s8 + $0x14] sm:$0xf]
        %v1068 = vld [vmem:[%s8 + $0x18] sm:$0xf]
        %v1069 = vld [vmem:[%s8 + $0x1c] sm:$0xf]
        %v1070 = vld [vmem:[%s8 + $0x20] sm:$0xf]
        %v1071 = vld [vmem:[%s8 + $0x24] sm:$0xf]
        %v1072 = vld [vmem:[%s8 + $0x28] sm:$0xf]
        %v1073 = vld [vmem:[%s8 + $0x2c] sm:$0xf]
        %v1074 = vld [vmem:[%s8 + $0x30] sm:$0xf]
        %v1075 = vld [vmem:[%s8 + $0x34] sm:$0xf]
        %v1076 = vld [vmem:[%s8 + $0x38] sm:$0xf]
        %v1077 = vld [vmem:[%s8 + $0x3c] sm:$0xf]
        %v1078 = vld [vmem:[%s8 + $0x40] sm:$0xf]
        %v1079 = vld [vmem:[%s8 + $0x44] sm:$0xf]
        %v1080 = vld [vmem:[%s8 + $0x48] sm:$0xf]
        %v1081 = vld [vmem:[%s8 + $0x4c] sm:$0xf]
        %v1082 = vld [vmem:[%s8 + $0x50] sm:$0xf]
        %v1083 = vld [vmem:[%s8 + $0x54] sm:$0xf]
        %v1084 = vld [vmem:[%s8 + $0x58] sm:$0xf]
        %v1085 = vld [vmem:[%s8 + $0x5c] sm:$0xf]
        %v1086 = vld [vmem:[%s8 + $0x60] sm:$0xf]
        %v1087 = vld [vmem:[%s8 + $0x64] sm:$0xf]
        %v1088 = vld [vmem:[%s8 + $0x68] sm:$0xf]
        %v1089 = vld [vmem:[%s8 + $0x6c] sm:$0xf]
        %v1090 = vld [vmem:[%s8 + $0x70] sm:$0xf]
        %v1091 = vld [vmem:[%s8 + $0x74] sm:$0xf]
        %v1092 = vld [vmem:[%s8 + $0x78] sm:$0xf]
        %v1093 = vld [vmem:[%s8 + $0x7c] sm:$0xf]
        %s1094 = sld [smem:[#allocation2]]
        %v1095 = vstv %s1094
        %v1128 = vunpack.c.l.b16 %v1062
        %v1129 = vunpack.c.l.b16 %v1063
        %v1130 = vunpack.c.l.b16 %v1064
        %v1131 = vunpack.c.l.b16 %v1065
        %v1132 = vunpack.c.l.b16 %v1066
        %v1133 = vunpack.c.l.b16 %v1067
        %v1134 = vunpack.c.l.b16 %v1068
        %v1135 = vunpack.c.l.b16 %v1069
        %v1136 = vunpack.c.l.b16 %v1070
        %v1137 = vunpack.c.l.b16 %v1071
        %v1138 = vunpack.c.l.b16 %v1072
        %v1139 = vunpack.c.l.b16 %v1073
        %v1140 = vunpack.c.l.b16 %v1074
        %v1141 = vunpack.c.l.b16 %v1075
        %v1142 = vunpack.c.l.b16 %v1076
        %v1143 = vunpack.c.l.b16 %v1077
        %v1144 = vunpack.c.l.b16 %v1078
        %v1145 = vunpack.c.l.b16 %v1079
        %v1146 = vunpack.c.l.b16 %v1080
        %v1147 = vunpack.c.l.b16 %v1081
        %v1148 = vunpack.c.l.b16 %v1082
        %v1149 = vunpack.c.l.b16 %v1083
        %v1150 = vunpack.c.l.b16 %v1084
        %v1151 = vunpack.c.l.b16 %v1085
        %v1152 = vunpack.c.l.b16 %v1086
        %v1153 = vunpack.c.l.b16 %v1087
        %v1154 = vunpack.c.l.b16 %v1088
        %v1155 = vunpack.c.l.b16 %v1089
        %v1156 = vunpack.c.l.b16 %v1090
        %v1157 = vunpack.c.l.b16 %v1091
        %v1158 = vunpack.c.l.b16 %v1092
        %v1159 = vunpack.c.l.b16 %v1093
        %v1160 = vpack.c.b16 %v1129, %v1128
        %v1161 = vpack.c.b16 %v1131, %v1130
        %v1162 = vpack.c.b16 %v1133, %v1132
        %v1163 = vpack.c.b16 %v1135, %v1134
        %v1164 = vpack.c.b16 %v1137, %v1136
        %v1165 = vpack.c.b16 %v1139, %v1138
        %v1166 = vpack.c.b16 %v1141, %v1140
        %v1167 = vpack.c.b16 %v1143, %v1142
        %v1168 = vpack.c.b16 %v1145, %v1144
        %v1169 = vpack.c.b16 %v1147, %v1146
        %v1170 = vpack.c.b16 %v1149, %v1148
        %v1171 = vpack.c.b16 %v1151, %v1150
        %v1172 = vpack.c.b16 %v1153, %v1152
        %v1173 = vpack.c.b16 %v1155, %v1154
        %v1174 = vpack.c.b16 %v1157, %v1156
        %v1175 = vpack.c.b16 %v1159, %v1158
        %1192 = vmatprep.subr.bf16.mxu0 0
        %1193 = vmatpush1.bf16.msra.mxu0 %v1167
        %1194 = vmatprep.subr.bf16.mxu0 0
        %1195 = vmatpush1.bf16.msra.mxu0 %v1166
        %1196 = vmatprep.subr.bf16.mxu0 0
        %1197 = vmatpush1.bf16.msra.mxu0 %v1165
        %1198 = vmatprep.subr.bf16.mxu0 0
        %1199 = vmatpush1.bf16.msra.mxu0 %v1164
        %1200 = vmatprep.subr.bf16.mxu0 0
        %1201 = vmatpush1.bf16.msra.mxu0 %v1163
        %1202 = vmatprep.subr.bf16.mxu0 0
        %1203 = vmatpush1.bf16.msra.mxu0 %v1162
        %1204 = vmatprep.subr.bf16.mxu0 0
        %1205 = vmatpush1.bf16.msra.mxu0 %v1161
        %1206 = vmatprep.subr.bf16.mxu0 0
        %1207 = vmatpush1.bf16.msra.mxu0 %v1160
        %1208 = vmatprep.subr.bf16.mxu0 0
        %1209 = vmatpush2.bf16.msra.mxu0 %v1175
        %1210 = vmatprep.subr.bf16.mxu0 0
        %1211 = vmatpush2.bf16.msra.mxu0 %v1174
        %1212 = vmatprep.subr.bf16.mxu0 0
        %1213 = vmatpush2.bf16.msra.mxu0 %v1173
        %1214 = vmatprep.subr.bf16.mxu0 0
        %1215 = vmatpush2.bf16.msra.mxu0 %v1172
        %1216 = vmatprep.subr.bf16.mxu0 0
        %1217 = vmatpush2.bf16.msra.mxu0 %v1171
        %1218 = vmatprep.subr.bf16.mxu0 0
        %1219 = vmatpush2.bf16.msra.mxu0 %v1170
        %1220 = vmatprep.subr.bf16.mxu0 0
        %1221 = vmatpush2.bf16.msra.mxu0 %v1169
        %1222 = vmatprep.subr.bf16.mxu0 0
        %1223 = vmatpush2.bf16.msra.mxu0 %v1168
        %1224 = vmatprep.mubr.bf16.mxu0 %v1061
        %1225 = vmatmul.mubr.bf16.gmra.mxu0 %v1060
        %v1226 = vpop.f32.mrf.mxu0
        %v1227 = vadd.f32 %v1095, %v1226
        %v1228 = vpop.f32.mrf.mxu0
        %v1229 = vpop.f32.mrf.mxu0
        %v1230 = vpop.f32.mrf.mxu0
        %1231 = vdwg.mxu0
        %vm1232 = vcmask 64512
        %v1233 = vsel %vm1232, %v1227, -inf
        %1234 = vmax.xlane.f32.xlu0 %v1233
        %v1235 = vpop.xlane.xlu0 %1234
        %v1236 = vsub.f32 %v1227, %v1235
        %v1237 = vmul.f32 %v1236, 1.442695
        %v1238 = vpow.pop %v1237
        %v1239 = vsel %vm1232, %v1238, 0.0
        %1240 = vadd.xlane.f32.xlu0 %v1239
        %v1241 = vpop.xlane.xlu0 %1240
        %v1242 = vrcp.pop %v1241
        %v1243 = vmul.f32 %v1238, %v1242
        %1245 = vset.pattern.permute.xlu0 0
        %1246 = vperm.xlu0 %1245, %v1243
        %v1247 = vpop.permute.xlu0 %1246
        %v1249 = vmul.f32 %v1247, %v638
        %1250 = vset.pattern.permute.xlu0 1
        %1251 = vperm.xlu0 %1250, %v1243
        %v1252 = vpop.permute.xlu0 %1251
        %v1254 = vmul.f32 %v1252, %v638
        %1256 = vrot.lane.b32.xlu0 %v1254, 96
        %v1257 = vpop.permute.xlu0 %1256
        %v1259 = vadd.f32 %v1249, %v1257
        %1260 = vset.pattern.permute.xlu0 2
        %1261 = vperm.xlu0 %1260, %v1243
        %v1262 = vpop.permute.xlu0 %1261
        %v1264 = vmul.f32 %v1262, %v638
        %1266 = vrot.lane.b32.xlu0 %v1264, 64
        %v1267 = vpop.permute.xlu0 %1266
        %v1269 = vadd.f32 %v1259, %v1267
        %1270 = vset.pattern.permute.xlu0 3
        %1271 = vperm.xlu0 %1270, %v1243
        %v1272 = vpop.permute.xlu0 %1271
        %v1274 = vmul.f32 %v1272, %v638
        %1276 = vrot.lane.b32.xlu0 %v1274, 32
        %v1277 = vpop.permute.xlu0 %1276
        %v1279 = vadd.f32 %v1269, %v1277
        %1280 = vset.pattern.permute.xlu0 4
        %1281 = vperm.xlu0 %1280, %v1243
        %v1282 = vpop.permute.xlu0 %1281
        %v1284 = vmul.f32 %v1282, %v640
        %v1285 = vadd.f32 %v1279, %v1284
        %1286 = vset.pattern.permute.xlu0 5
        %1287 = vperm.xlu0 %1286, %v1243
        %v1288 = vpop.permute.xlu0 %1287
        %v1290 = vmul.f32 %v1288, %v640
        %1292 = vrot.lane.b32.xlu0 %v1290, 96
        %v1293 = vpop.permute.xlu0 %1292
        %v1295 = vadd.f32 %v1285, %v1293
        %1296 = vset.pattern.permute.xlu0 6
        %1297 = vperm.xlu0 %1296, %v1243
        %v1298 = vpop.permute.xlu0 %1297
        %v1300 = vmul.f32 %v1298, %v640
        %1302 = vrot.lane.b32.xlu0 %v1300, 64
        %v1303 = vpop.permute.xlu0 %1302
        %v1305 = vadd.f32 %v1295, %v1303
        %1306 = vset.pattern.permute.xlu0 7
        %1307 = vperm.xlu0 %1306, %v1243
        %v1308 = vpop.permute.xlu0 %1307
        %v1310 = vmul.f32 %v1308, %v640
        %1312 = vrot.lane.b32.xlu0 %v1310, 32
        %v1313 = vpop.permute.xlu0 %1312
        %v1315 = vadd.f32 %v1305, %v1313
        %vm1316 = vcmask 261120
        %1317 = vst.msk [vmem:[%s393] sm:$0xff] %vm1316, %v1315
        %s1318 = sand.u32 %s250, 1
        %s1319 = scalar_lea.sflag [#allocation5], %s1318
        %s1320 = sand.u32 %s250, 1
        %s1321 = smul.addr %s1320, 8
        %s1322 = scalar_lea.vmem [#allocation9], %s1321
        // Predicated region
        $region73: #{tpu_custom_call.1} parent=59 // pred_check
          %p1323 = pneg %p260
        $region74: #{tpu_custom_call.1} parent=59 // pred_check_branch
          %1325 = sbr.rel (%p1323) target = $region76
        $region75: #{tpu_custom_call.1} parent=59 // pred_region
          %s1327 = ssub.s32 128, 128
          %1328 = vsyncadd %s1319, %s1327
          %s1329 = smul.addr %s27, 128
          %s1330 = scalar_lea.hbm %s10, %s1329
          %s1332 = sshll.u32 %s1322, 4
          %s1333 = int_to_ptr.vmem [resolvable:$true] %s1332
          %1335 = dma.vmem_to_hbm [thread:$0]  %s1333, 128, %s1330, %s1319
        $region76: #{tpu_custom_call.1} parent=59 // pred_fallthru
          _
      $region60: #{tpu_custom_call.1} parent=5 // pred_fallthru
        _
      %p1336 = scmp.le.s32.totalorder 2, %s22
      // Predicated region
      $region77: #{tpu_custom_call.1} parent=5 // pred_check
        %p1337 = pneg %p1336
      $region78: #{tpu_custom_call.1} parent=5 // pred_check_branch
        %1339 = sbr.rel (%p1337) target = $region80
      $region79: #{tpu_custom_call.1} parent=5 // pred_region
        %s1340 = ssub.s32 %s22, 2
        // Predicated region
        $region81: #{tpu_custom_call.1} parent=79 // pred_check
          %p1341 = pneg %p266
        $region82: #{tpu_custom_call.1} parent=79 // pred_check_branch
          %1343 = sbr.rel (%p1341) target = $region84
        $region83: #{tpu_custom_call.1} parent=79 // pred_region
          %s1344 = sand.u32 %s251, 1
          %s1345 = scalar_lea.sflag [#allocation5], %s1344
          %s1346 = sand.u32 %s251, 1
          %s1347 = smul.addr %s1346, 8
          %s1348 = scalar_lea.vmem [#allocation9], %s1347
          %1349 = dma.done %s1345, 128
        $region84: #{tpu_custom_call.1} parent=79 // pred_fallthru
          _
      $region80: #{tpu_custom_call.1} parent=5 // pred_fallthru
        _
    $region6: #{tpu_custom_call.1} parent=1 // loop_footer
      %s26 = sadd.s32 1, %s22
    $region7: #{tpu_custom_call.1} parent=1 // loop_footer_branch
      %21 = sbr.rel target = $region3
    $region8: #{tpu_custom_call.1} parent=1 // loop_exit
      _
    %1350 = vsyncpa [#allocation4], 1
    %s1351 = scalar_lea.sflag [#allocation4], 1
    %1352 = vsyncpa %s1351, 1
    %1353 = vsyncpa [#allocation7], 1
    %1354 = vsyncpa [#allocation5], 1
    %s1355 = scalar_lea.sflag [#allocation5], 1
    %1356 = vsyncpa %s1355, 1

</llo_original>
